<compile_context>
chip_gen: v5e
topology: v5e:2x2
jax: 0.10.0
libtpu: 0.0.40
codegen_flags: <defaults>
</compile_context>

<pallas_src>
import jax
import jax.numpy as jnp
from jax import lax
from jax.experimental import pallas as pl
from jax.experimental.pallas import tpu as pltpu

# ---- module hyper-parameters (consistent with the PyTorch forward) ----
N_NODES = 16          # nnodes  (adjacency is nnodes x nnodes, GCN feature dim == nnodes)
N_LAYER_GCN = 2       # nlayer_gcn
N_FEATURE_MLP = 32    # nfeature_mlp
N_LATENT = 8          # nlatent (unused in forward)
TAU = 1.0             # tau     (unused in forward)

BLOCK_B = 8           # samples per grid step (pool matrix = exactly one (8,128) f32 vreg)
OUT_WIDTH = 128       # lane-dense output / bias slab width
N_MLP_LAYERS = 5

# fused two-head MLP dimensions (prop_pred1 + prop_pred2 packed side by side)
DIMS1 = (2 * N_NODES, N_FEATURE_MLP, 64, 32, 16, 4)
DIMS2 = (2 * N_NODES, N_FEATURE_MLP, 64, 32, 8, 1)
MLP_ROWS = tuple([DIMS1[0]] + [DIMS1[i] + DIMS2[i] for i in range(1, N_MLP_LAYERS)])
MLP_COLS = tuple(DIMS1[i + 1] + DIMS2[i + 1] for i in range(N_MLP_LAYERS))
_offs, _acc = [], 0
for _r in MLP_ROWS:
    _offs.append(_acc)
    _acc += _r
MLP_OFFS = tuple(_offs)
MLP_TOTAL_ROWS = _acc            # 312 (every layer's row count is a multiple of 8)
VEC_ROWS = 16                    # 2*L GCN bias rows + 5 fused MLP bias rows, padded to 16


def _elu(x):
    # ELU(alpha=1): x if x > 0 else exp(x) - 1 (exp(min(x,0)) form for safe lowering).
    return jnp.where(x > 0, x, jnp.exp(jnp.minimum(x, 0.0)) - 1.0)


# --------------------------------------------------------------------------------------
# Kernel: BLOCK_B samples per grid step
# --------------------------------------------------------------------------------------
def classifier_kernel(a_fc_ref, a_sc_ref, age_ref, gen_ref,
                      gcn_w_ref, pool_ref, vec_ref, mlp_w_ref, out_ref):
    f32 = jnp.float32
    bf16 = jnp.bfloat16
    n = N_NODES

    pool = pool_ref[...]                                   # (BT, BT*n) f32, per-sample row sums

    def gcn_branch(a_ref, branch):
        # initial z = A @ I == A : stack the per-sample adjacencies along sublanes
        z = jnp.concatenate([a_ref[s] for s in range(BLOCK_B)], axis=0)       # (BT*n, n)
        for l in range(N_LAYER_GCN):
            if l > 0:
                # per-sample A @ z (static unrolled; each is a tiny 2-D MXU matmul)
                z = jnp.concatenate(
                    [jnp.dot(a_ref[s], z[s * n:(s + 1) * n, :],
                             preferred_element_type=f32)
                     for s in range(BLOCK_B)], axis=0)                        # (BT*n, n)
            w = gcn_w_ref[branch * N_LAYER_GCN + l]                           # (n, n) f32
            b = vec_ref[branch * N_LAYER_GCN + l:branch * N_LAYER_GCN + l + 1, 0:n]
            z = _elu(jnp.dot(z, w, preferred_element_type=f32) + b)
        # per-sample row sums via one pooling matmul -> (BT, n)
        return jnp.dot(pool, z, preferred_element_type=f32)

    z_fc = gcn_branch(a_fc_ref, 0)                                            # (BT, n)
    z_sc = gcn_branch(a_sc_ref, 1)                                            # (BT, n)
    x = jnp.concatenate([z_fc, z_sc], axis=1)                                 # (BT, 2n)

    # ---- fused two-head MLP over the ragged bf16 weight slab ----
    for i in range(N_MLP_LAYERS):
        off, rows, cols = MLP_OFFS[i], MLP_ROWS[i], MLP_COLS[i]
        w = mlp_w_ref[off:off + rows, 0:cols]                                 # (rows, cols) bf16
        x = jnp.dot(x.astype(bf16), w, preferred_element_type=f32)
        x = x + vec_ref[2 * N_LAYER_GCN + i:2 * N_LAYER_GCN + i + 1, 0:cols]
        if i < N_MLP_LAYERS - 1:
            x = _elu(x)
    # x: (BT, 5) -> lanes 0..3 = prop_pred1 logits, lane 4 = prop_pred2 logit

    logits1 = x[:, 0:4]                                                       # (BT, 4)
    logit2 = x[:, 4:5]                                                        # (BT, 1)

    # softmax over dim=1
    m = jnp.max(logits1, axis=1, keepdims=True)
    e = jnp.exp(logits1 - m)
    prop1 = e / jnp.sum(e, axis=1, keepdims=True)                             # (BT, 4)

    # sigmoid
    prop2 = 1.0 / (1.0 + jnp.exp(-logit2))                                    # (BT, 1)

    # BCEWithLogitsLoss(input=age, target=prop1), mean reduction (stable form)
    age = age_ref[...]                                                        # (BT, 4)
    gender = gen_ref[...]                                                     # (BT, 1)
    bce = jnp.mean(jnp.maximum(age, 0.0) - age * prop1
                   + jnp.log(1.0 + jnp.exp(-jnp.abs(age))),
                   axis=1, keepdims=True)                                     # (BT, 1)
    loss = 5.0 * bce + (gender - prop2) ** 2                                  # (BT, 1)

    # single lane-dense store (result assembled in registers)
    out_ref[...] = jnp.concatenate(
        [prop1, prop2, loss, jnp.zeros((BLOCK_B, OUT_WIDTH - 6), f32)], axis=1)


# --------------------------------------------------------------------------------------
# Host wrappers
# --------------------------------------------------------------------------------------
def _forward_batched_impl(A_fc, A_sc, age, gender, packed):
    f32 = jnp.float32
    B = A_fc.shape[0]
    pad = (-B) % BLOCK_B
    if pad:
        A_fc = jnp.concatenate([A_fc, jnp.zeros((pad, N_NODES, N_NODES), f32)], axis=0)
        A_sc = jnp.concatenate([A_sc, jnp.zeros((pad, N_NODES, N_NODES), f32)], axis=0)
        age = jnp.concatenate([age, jnp.zeros((pad, 4), f32)], axis=0)
        gender = jnp.concatenate([gender, jnp.zeros((pad, 1), f32)], axis=0)
    Bp = B + pad

    grid_spec = pltpu.PrefetchScalarGridSpec(
        num_scalar_prefetch=0,
        grid=(Bp // BLOCK_B,),
        in_specs=[
            # per-sample inputs (passed as-is: no host-side slab assembly)
            pl.BlockSpec((BLOCK_B, N_NODES, N_NODES), lambda g: (g, 0, 0)),
            pl.BlockSpec((BLOCK_B, N_NODES, N_NODES), lambda g: (g, 0, 0)),
            pl.BlockSpec((BLOCK_B, 4), lambda g: (g, 0)),
            pl.BlockSpec((BLOCK_B, 1), lambda g: (g, 0)),
            # weight slabs: constant block index -> DMA'd once, stay resident in VMEM
            pl.BlockSpec((2 * N_LAYER_GCN, N_NODES, N_NODES), lambda g: (0, 0, 0)),
            pl.BlockSpec((BLOCK_B, BLOCK_B * N_NODES), lambda g: (0, 0)),
            pl.BlockSpec((VEC_ROWS, OUT_WIDTH), lambda g: (0, 0)),
            pl.BlockSpec((MLP_TOTAL_ROWS, OUT_WIDTH), lambda g: (0, 0)),
        ],
        out_specs=pl.BlockSpec((BLOCK_B, OUT_WIDTH), lambda g: (g, 0)),
    )

    out = pl.pallas_call(
        classifier_kernel,
        out_shape=jax.ShapeDtypeStruct((Bp, OUT_WIDTH), f32),
        grid_spec=grid_spec,
        compiler_params=pltpu.CompilerParams(dimension_semantics=("parallel",)),
    )(A_fc.astype(f32), A_sc.astype(f32), age.astype(f32), gender.astype(f32),
      packed["gcn_w"], packed["pool"], packed["vec"], packed["mlp_w"])

    out = out[:B]
    return out[:, 0:4], out[:, 4], out[:, 5]       # prop1 (B,4), prop2 (B,), loss (B,)


classifier_forward_batched = jax.jit(_forward_batched_impl)


def _forward_single_impl(A_fc, A_sc, age, gender, packed):
    # single-sample API matching the PyTorch forward: prop1 (1,4), prop2 (1,), loss (1,)
    return _forward_batched_impl(A_fc[None, ...], A_sc[None, ...],
                                 age.reshape(1, 4), gender.reshape(1, 1), packed)


classifier_forward = jax.jit(_forward_single_impl)


# --------------------------------------------------------------------------------------
# Parameter init (PyTorch-style) and host-side packing into kernel slabs
# --------------------------------------------------------------------------------------
def _linear_params(key, fan_in, fan_out):
    # PyTorch nn.Linear default init: U(-1/sqrt(fan_in), 1/sqrt(fan_in)); stored as (in, out)
    kw, kb = jax.random.split(key)
    bound = 1.0 / jnp.sqrt(fan_in)
    w = jax.random.uniform(kw, (fan_in, fan_out), jnp.float32, -bound, bound)
    b = jax.random.uniform(kb, (1, fan_out), jnp.float32, -bound, bound)
    return w, b


def init_params(key):
    keys = jax.random.split(key, 4)
    n = N_NODES

    def gcn_stack_params(k):
        ws, bs = [], []
        for l in range(N_LAYER_GCN):
            w, b = _linear_params(jax.random.fold_in(k, l), n, n)
            ws.append(w)
            bs.append(b.reshape(n))
        return jnp.stack(ws, 0), jnp.stack(bs, 0)            # (L, N, N), (L, N)

    wfc, bfc = gcn_stack_params(keys[0])
    wsc, bsc = gcn_stack_params(keys[1])

    pp1 = [_linear_params(jax.random.fold_in(keys[2], i), DIMS1[i], DIMS1[i + 1])
           for i in range(N_MLP_LAYERS)]
    pp2 = [_linear_params(jax.random.fold_in(keys[3], i), DIMS2[i], DIMS2[i + 1])
           for i in range(N_MLP_LAYERS)]

    return {"wfc": wfc, "bfc": bfc, "wsc": wsc, "bsc": bsc,
            "prop_pred1": pp1, "prop_pred2": pp2}


def _block_diag(a, b):
    r1, c1 = a.shape
    r2, c2 = b.shape
    out = jnp.zeros((r1 + r2, c1 + c2), jnp.float32)
    return out.at[:r1, :c1].set(a).at[r1:, c1:].set(b)


def pack_params(params):
    """Pack per-layer parameters into the kernel slabs (done once, host-side)."""
    f32 = jnp.float32

    # GCN weights: (2*L, n, n) f32, order [fc_0..fc_{L-1}, sc_0..sc_{L-1}] (tiny -> keep f32)
    gcn_w = jnp.concatenate([params["wfc"], params["wsc"]], axis=0).astype(f32)

    # bias slab: rows 0..2L-1 = GCN biases, rows 2L..2L+4 = fused MLP biases
    vec = jnp.zeros((VEC_ROWS, OUT_WIDTH), f32)
    for l in range(N_LAYER_GCN):
        vec = vec.at[l, :N_NODES].set(params["bfc"][l])
        vec = vec.at[N_LAYER_GCN + l, :N_NODES].set(params["bsc"][l])

    # ragged-packed fused MLP weights (layer 0 concatenated, layers 1..4 block-diagonal)
    p1, p2 = params["prop_pred1"], params["prop_pred2"]
    mlp_w = jnp.zeros((MLP_TOTAL_ROWS, OUT_WIDTH), f32)
    for i in range(N_MLP_LAYERS):
        if i == 0:
            w = jnp.concatenate([p1[0][0], p2[0][0]], axis=1)            # (32, 64)
        else:
            w = _block_diag(p1[i][0], p2[i][0])                          # (rows_i, cols_i)
        b = jnp.concatenate([p1[i][1].reshape(-1), p2[i][1].reshape(-1)])
        mlp_w = mlp_w.at[MLP_OFFS[i]:MLP_OFFS[i] + MLP_ROWS[i], :MLP_COLS[i]].set(w)
        vec = vec.at[2 * N_LAYER_GCN + i, :MLP_COLS[i]].set(b)

    # per-sample row-sum pooling matrix: row s has ones on columns [s*n, (s+1)*n)
    pool = jnp.repeat(jnp.eye(BLOCK_B, dtype=f32), N_NODES, axis=1)      # (8, 128)

    return {"gcn_w": gcn_w,
            "mlp_w": mlp_w.astype(jnp.bfloat16),    # bf16 slab: halves the dominant DMA
            "vec": vec,
            "pool": pool}


# --------------------------------------------------------------------------------------
# Pure-JAX reference (unfused, f32), used for a correctness check in the driver
# --------------------------------------------------------------------------------------
def reference_forward(A_fc, A_sc, age, gender, params):
    hi = lax.Precision.HIGHEST

    def elu(x):
        return jnp.where(x > 0, x, jnp.exp(jnp.minimum(x, 0.0)) - 1.0)

    def gcn(a, ws, bs):
        z = jnp.eye(N_NODES, dtype=jnp.float32)
        for l in range(N_LAYER_GCN):
            z = jnp.dot(a, z, precision=hi)
            z = jnp.dot(z, ws[l], precision=hi) + bs[l][None, :]
            z = elu(z)
        return z

    z_fc = gcn(A_fc, params["wfc"], params["bfc"])
    z_sc = gcn(A_sc, params["wsc"], params["bsc"])
    z_prop = jnp.concatenate([z_fc.sum(0), z_sc.sum(0)])[None, :]

    def mlp(x, layers):
        for i, (w, b) in enumerate(layers):
            x = jnp.dot(x, w, precision=hi) + b
            if i < len(layers) - 1:
                x = elu(x)
        return x

    logits1 = mlp(z_prop, params["prop_pred1"])
    logits2 = mlp(z_prop, params["prop_pred2"])
    prop1 = jax.nn.softmax(logits1, axis=1)
    prop2 = jax.nn.sigmoid(logits2).reshape(-1)
    x, y = age, prop1
    bce = jnp.mean(jnp.maximum(x, 0.0) - x * y + jnp.log(1.0 + jnp.exp(-jnp.abs(x))))
    loss = 5.0 * bce + (gender - prop2) ** 2
    return prop1, prop2, loss


# --------------------------------------------------------------------------------------
if __name__ == "__main__":
    key = jax.random.PRNGKey(0)
    k_params, k_afc, k_asc, k_age, k_gender = jax.random.split(key, 5)

    raw_params = init_params(k_params)
    packed = pack_params(raw_params)

    B = 16   # 2 grid steps of BLOCK_B samples
    A_fc = jax.random.normal(k_afc, (B, N_NODES, N_NODES), jnp.float32)
    A_sc = jax.random.normal(k_asc, (B, N_NODES, N_NODES), jnp.float32)
    age = jax.random.normal(k_age, (B, 4), jnp.float32)         # logits for BCEWithLogits
    gender = jax.random.uniform(k_gender, (B, 1), jnp.float32)  # targets in (0, 1)

    prop1, prop2, loss = classifier_forward_batched(A_fc, A_sc, age, gender, packed)
    jax.block_until_ready((prop1, prop2, loss))
    assert prop1.shape == (B, 4) and prop2.shape == (B,) and loss.shape == (B,)
    assert bool(jnp.all(jnp.isfinite(prop1))) and bool(jnp.all(jnp.isfinite(loss)))

    # single-sample API matching the PyTorch forward: prop1 (1,4), prop2 (1,), loss (1,)
    p1s, p2s, ls = classifier_forward(A_fc[0], A_sc[0], age[0:1], gender[0, 0:1], packed)
    jax.block_until_ready((p1s, p2s, ls))
    assert p1s.shape == (1, 4) and p2s.shape == (1,) and ls.shape == (1,)
    assert bool(jnp.allclose(p1s, prop1[0:1], atol=1e-5, rtol=1e-5))

    # correctness vs. unfused pure-JAX f32 reference (bf16 MLP weights -> 2e-2 tolerance)
    ok = True
    for b in range(B):
        r1, r2, rl = reference_forward(A_fc[b], A_sc[b], age[b:b + 1], gender[b], raw_params)
        ok &= bool(jnp.allclose(prop1[b:b + 1], r1, atol=2e-2, rtol=2e-2))
        ok &= bool(jnp.allclose(prop2[b], r2, atol=2e-2, rtol=2e-2))
        ok &= bool(jnp.allclose(loss[b], rl, atol=2e-2, rtol=2e-2))
    assert ok, "Pallas kernel disagrees with pure-JAX reference"

    print("KERNEL_OK")
</pallas_src>

<mosaic_0001>
module attributes {stable_mosaic.version = 11 : i64} {
  func.func @classifier_kernel(%arg0: i32, %arg1: memref<8x16x16xf32, #tpu.memory_space<vmem>>, %arg2: memref<8x16x16xf32, #tpu.memory_space<vmem>>, %arg3: memref<8x4xf32, #tpu.memory_space<vmem>>, %arg4: memref<8x1xf32, #tpu.memory_space<vmem>>, %arg5: memref<4x16x16xf32, #tpu.memory_space<vmem>>, %arg6: memref<8x128xf32, #tpu.memory_space<vmem>>, %arg7: memref<16x128xf32, #tpu.memory_space<vmem>>, %arg8: memref<312x128xbf16, #tpu.memory_space<vmem>>, %arg9: memref<8x128xf32, #tpu.memory_space<vmem>>) attributes {dimension_semantics = [#tpu.dimension_semantics<parallel>], iteration_bounds = array<i64: 2>, scalar_prefetch = 0 : i64, scratch_operands = 0 : i64, tpu.core_type = #tpu.core_type<tc>, window_params = [{transform_indices = @transform_0, window_bounds = array<i64: 8, 16, 16>}, {transform_indices = @transform_1, window_bounds = array<i64: 8, 16, 16>}, {transform_indices = @transform_2, window_bounds = array<i64: 8, 4>}, {transform_indices = @transform_3, window_bounds = array<i64: 8, 1>}, {pipeline_mode = #tpu.pipeline_mode<synchronous>, transform_indices = @transform_4, window_bounds = array<i64: 4, 16, 16>}, {pipeline_mode = #tpu.pipeline_mode<synchronous>, transform_indices = @transform_5, window_bounds = array<i64: 8, 128>}, {pipeline_mode = #tpu.pipeline_mode<synchronous>, transform_indices = @transform_6, window_bounds = array<i64: 16, 128>}, {pipeline_mode = #tpu.pipeline_mode<synchronous>, transform_indices = @transform_7, window_bounds = array<i64: 312, 128>}, {transform_indices = @transform_8, window_bounds = array<i64: 8, 128>}]} {
    %c0 = arith.constant 0 : index
    %c0_0 = arith.constant 0 : index
    %0 = vector.load %arg6[%c0, %c0_0] : memref<8x128xf32, #tpu.memory_space<vmem>>, vector<8x128xf32>
    %c0_1 = arith.constant 0 : index
    %c0_2 = arith.constant 0 : index
    %c0_3 = arith.constant 0 : index
    %1 = vector.load %arg1[%c0_1, %c0_2, %c0_3] : memref<8x16x16xf32, #tpu.memory_space<vmem>>, vector<1x16x16xf32>
    %2 = vector.shape_cast %1 : vector<1x16x16xf32> to vector<16x16xf32>
    %c1 = arith.constant 1 : index
    %c0_4 = arith.constant 0 : index
    %c0_5 = arith.constant 0 : index
    %3 = vector.load %arg1[%c1, %c0_4, %c0_5] : memref<8x16x16xf32, #tpu.memory_space<vmem>>, vector<1x16x16xf32>
    %4 = vector.shape_cast %3 : vector<1x16x16xf32> to vector<16x16xf32>
    %c2 = arith.constant 2 : index
    %c0_6 = arith.constant 0 : index
    %c0_7 = arith.constant 0 : index
    %5 = vector.load %arg1[%c2, %c0_6, %c0_7] : memref<8x16x16xf32, #tpu.memory_space<vmem>>, vector<1x16x16xf32>
    %6 = vector.shape_cast %5 : vector<1x16x16xf32> to vector<16x16xf32>
    %c3 = arith.constant 3 : index
    %c0_8 = arith.constant 0 : index
    %c0_9 = arith.constant 0 : index
    %7 = vector.load %arg1[%c3, %c0_8, %c0_9] : memref<8x16x16xf32, #tpu.memory_space<vmem>>, vector<1x16x16xf32>
    %8 = vector.shape_cast %7 : vector<1x16x16xf32> to vector<16x16xf32>
    %c4 = arith.constant 4 : index
    %c0_10 = arith.constant 0 : index
    %c0_11 = arith.constant 0 : index
    %9 = vector.load %arg1[%c4, %c0_10, %c0_11] : memref<8x16x16xf32, #tpu.memory_space<vmem>>, vector<1x16x16xf32>
    %10 = vector.shape_cast %9 : vector<1x16x16xf32> to vector<16x16xf32>
    %c5 = arith.constant 5 : index
    %c0_12 = arith.constant 0 : index
    %c0_13 = arith.constant 0 : index
    %11 = vector.load %arg1[%c5, %c0_12, %c0_13] : memref<8x16x16xf32, #tpu.memory_space<vmem>>, vector<1x16x16xf32>
    %12 = vector.shape_cast %11 : vector<1x16x16xf32> to vector<16x16xf32>
    %c6 = arith.constant 6 : index
    %c0_14 = arith.constant 0 : index
    %c0_15 = arith.constant 0 : index
    %13 = vector.load %arg1[%c6, %c0_14, %c0_15] : memref<8x16x16xf32, #tpu.memory_space<vmem>>, vector<1x16x16xf32>
    %14 = vector.shape_cast %13 : vector<1x16x16xf32> to vector<16x16xf32>
    %c7 = arith.constant 7 : index
    %c0_16 = arith.constant 0 : index
    %c0_17 = arith.constant 0 : index
    %15 = vector.load %arg1[%c7, %c0_16, %c0_17] : memref<8x16x16xf32, #tpu.memory_space<vmem>>, vector<1x16x16xf32>
    %16 = vector.shape_cast %15 : vector<1x16x16xf32> to vector<16x16xf32>
    %17 = tpu.concatenate %2, %4, %6, %8, %10, %12, %14, %16 in 0 : vector<16x16xf32>, vector<16x16xf32>, vector<16x16xf32>, vector<16x16xf32>, vector<16x16xf32>, vector<16x16xf32>, vector<16x16xf32>, vector<16x16xf32> -> vector<128x16xf32>
    %c0_18 = arith.constant 0 : index
    %c0_19 = arith.constant 0 : index
    %c0_20 = arith.constant 0 : index
    %18 = vector.load %arg5[%c0_18, %c0_19, %c0_20] : memref<4x16x16xf32, #tpu.memory_space<vmem>>, vector<1x16x16xf32>
    %19 = vector.shape_cast %18 : vector<1x16x16xf32> to vector<16x16xf32>
    %c0_21 = arith.constant 0 : index
    %c0_22 = arith.constant 0 : index
    %20 = vector.load %arg7[%c0_21, %c0_22] : memref<16x128xf32, #tpu.memory_space<vmem>>, vector<1x16xf32>
    %cst = arith.constant dense<0.000000e+00> : vector<128x16xf32>
    %21 = tpu.matmul %17, %19, %cst {dimension_numbers = #tpu.dot_dimension_numbers<[1], [0], [0], [1], [0, 0, 1, 1], [], []>} : vector<128x16xf32>, vector<16x16xf32>, vector<128x16xf32> -> vector<128x16xf32>
    %22 = vector.broadcast %20 : vector<1x16xf32> to vector<128x16xf32>
    %23 = arith.addf %21, %22 : vector<128x16xf32>
    %cst_23 = arith.constant 0.000000e+00 : f32
    %24 = vector.broadcast %cst_23 : f32 to vector<128x16xf32>
    %25 = arith.cmpf ogt, %23, %24 : vector<128x16xf32>
    %cst_24 = arith.constant 0.000000e+00 : f32
    %26 = vector.broadcast %cst_24 : f32 to vector<128x16xf32>
    %27 = arith.minimumf %23, %26 : vector<128x16xf32>
    %28 = math.exp %27 : vector<128x16xf32>
    %cst_25 = arith.constant 1.000000e+00 : f32
    %29 = vector.broadcast %cst_25 : f32 to vector<128x16xf32>
    %30 = arith.subf %28, %29 : vector<128x16xf32>
    %31 = arith.select %25, %23, %30 : vector<128x16xi1>, vector<128x16xf32>
    %c0_26 = arith.constant 0 : index
    %c0_27 = arith.constant 0 : index
    %c0_28 = arith.constant 0 : index
    %32 = vector.load %arg1[%c0_26, %c0_27, %c0_28] : memref<8x16x16xf32, #tpu.memory_space<vmem>>, vector<1x16x16xf32>
    %33 = vector.shape_cast %32 : vector<1x16x16xf32> to vector<16x16xf32>
    %34 = vector.extract_strided_slice %31 {offsets = [0, 0], sizes = [16, 16], strides = [1, 1]} : vector<128x16xf32> to vector<16x16xf32>
    %cst_29 = arith.constant dense<0.000000e+00> : vector<16x16xf32>
    %35 = tpu.matmul %33, %34, %cst_29 {dimension_numbers = #tpu.dot_dimension_numbers<[1], [0], [0], [1], [0, 0, 1, 1], [], []>} : vector<16x16xf32>, vector<16x16xf32>, vector<16x16xf32> -> vector<16x16xf32>
    %c1_30 = arith.constant 1 : index
    %c0_31 = arith.constant 0 : index
    %c0_32 = arith.constant 0 : index
    %36 = vector.load %arg1[%c1_30, %c0_31, %c0_32] : memref<8x16x16xf32, #tpu.memory_space<vmem>>, vector<1x16x16xf32>
    %37 = vector.shape_cast %36 : vector<1x16x16xf32> to vector<16x16xf32>
    %38 = vector.extract_strided_slice %31 {offsets = [16, 0], sizes = [16, 16], strides = [1, 1]} : vector<128x16xf32> to vector<16x16xf32>
    %cst_33 = arith.constant dense<0.000000e+00> : vector<16x16xf32>
    %39 = tpu.matmul %37, %38, %cst_33 {dimension_numbers = #tpu.dot_dimension_numbers<[1], [0], [0], [1], [0, 0, 1, 1], [], []>} : vector<16x16xf32>, vector<16x16xf32>, vector<16x16xf32> -> vector<16x16xf32>
    %c2_34 = arith.constant 2 : index
    %c0_35 = arith.constant 0 : index
    %c0_36 = arith.constant 0 : index
    %40 = vector.load %arg1[%c2_34, %c0_35, %c0_36] : memref<8x16x16xf32, #tpu.memory_space<vmem>>, vector<1x16x16xf32>
    %41 = vector.shape_cast %40 : vector<1x16x16xf32> to vector<16x16xf32>
    %42 = vector.extract_strided_slice %31 {offsets = [32, 0], sizes = [16, 16], strides = [1, 1]} : vector<128x16xf32> to vector<16x16xf32>
    %cst_37 = arith.constant dense<0.000000e+00> : vector<16x16xf32>
    %43 = tpu.matmul %41, %42, %cst_37 {dimension_numbers = #tpu.dot_dimension_numbers<[1], [0], [0], [1], [0, 0, 1, 1], [], []>} : vector<16x16xf32>, vector<16x16xf32>, vector<16x16xf32> -> vector<16x16xf32>
    %c3_38 = arith.constant 3 : index
    %c0_39 = arith.constant 0 : index
    %c0_40 = arith.constant 0 : index
    %44 = vector.load %arg1[%c3_38, %c0_39, %c0_40] : memref<8x16x16xf32, #tpu.memory_space<vmem>>, vector<1x16x16xf32>
    %45 = vector.shape_cast %44 : vector<1x16x16xf32> to vector<16x16xf32>
    %46 = vector.extract_strided_slice %31 {offsets = [48, 0], sizes = [16, 16], strides = [1, 1]} : vector<128x16xf32> to vector<16x16xf32>
    %cst_41 = arith.constant dense<0.000000e+00> : vector<16x16xf32>
    %47 = tpu.matmul %45, %46, %cst_41 {dimension_numbers = #tpu.dot_dimension_numbers<[1], [0], [0], [1], [0, 0, 1, 1], [], []>} : vector<16x16xf32>, vector<16x16xf32>, vector<16x16xf32> -> vector<16x16xf32>
    %c4_42 = arith.constant 4 : index
    %c0_43 = arith.constant 0 : index
    %c0_44 = arith.constant 0 : index
    %48 = vector.load %arg1[%c4_42, %c0_43, %c0_44] : memref<8x16x16xf32, #tpu.memory_space<vmem>>, vector<1x16x16xf32>
    %49 = vector.shape_cast %48 : vector<1x16x16xf32> to vector<16x16xf32>
    %50 = vector.extract_strided_slice %31 {offsets = [64, 0], sizes = [16, 16], strides = [1, 1]} : vector<128x16xf32> to vector<16x16xf32>
    %cst_45 = arith.constant dense<0.000000e+00> : vector<16x16xf32>
    %51 = tpu.matmul %49, %50, %cst_45 {dimension_numbers = #tpu.dot_dimension_numbers<[1], [0], [0], [1], [0, 0, 1, 1], [], []>} : vector<16x16xf32>, vector<16x16xf32>, vector<16x16xf32> -> vector<16x16xf32>
    %c5_46 = arith.constant 5 : index
    %c0_47 = arith.constant 0 : index
    %c0_48 = arith.constant 0 : index
    %52 = vector.load %arg1[%c5_46, %c0_47, %c0_48] : memref<8x16x16xf32, #tpu.memory_space<vmem>>, vector<1x16x16xf32>
    %53 = vector.shape_cast %52 : vector<1x16x16xf32> to vector<16x16xf32>
    %54 = vector.extract_strided_slice %31 {offsets = [80, 0], sizes = [16, 16], strides = [1, 1]} : vector<128x16xf32> to vector<16x16xf32>
    %cst_49 = arith.constant dense<0.000000e+00> : vector<16x16xf32>
    %55 = tpu.matmul %53, %54, %cst_49 {dimension_numbers = #tpu.dot_dimension_numbers<[1], [0], [0], [1], [0, 0, 1, 1], [], []>} : vector<16x16xf32>, vector<16x16xf32>, vector<16x16xf32> -> vector<16x16xf32>
    %c6_50 = arith.constant 6 : index
    %c0_51 = arith.constant 0 : index
    %c0_52 = arith.constant 0 : index
    %56 = vector.load %arg1[%c6_50, %c0_51, %c0_52] : memref<8x16x16xf32, #tpu.memory_space<vmem>>, vector<1x16x16xf32>
    %57 = vector.shape_cast %56 : vector<1x16x16xf32> to vector<16x16xf32>
    %58 = vector.extract_strided_slice %31 {offsets = [96, 0], sizes = [16, 16], strides = [1, 1]} : vector<128x16xf32> to vector<16x16xf32>
    %cst_53 = arith.constant dense<0.000000e+00> : vector<16x16xf32>
    %59 = tpu.matmul %57, %58, %cst_53 {dimension_numbers = #tpu.dot_dimension_numbers<[1], [0], [0], [1], [0, 0, 1, 1], [], []>} : vector<16x16xf32>, vector<16x16xf32>, vector<16x16xf32> -> vector<16x16xf32>
    %c7_54 = arith.constant 7 : index
    %c0_55 = arith.constant 0 : index
    %c0_56 = arith.constant 0 : index
    %60 = vector.load %arg1[%c7_54, %c0_55, %c0_56] : memref<8x16x16xf32, #tpu.memory_space<vmem>>, vector<1x16x16xf32>
    %61 = vector.shape_cast %60 : vector<1x16x16xf32> to vector<16x16xf32>
    %62 = vector.extract_strided_slice %31 {offsets = [112, 0], sizes = [16, 16], strides = [1, 1]} : vector<128x16xf32> to vector<16x16xf32>
    %cst_57 = arith.constant dense<0.000000e+00> : vector<16x16xf32>
    %63 = tpu.matmul %61, %62, %cst_57 {dimension_numbers = #tpu.dot_dimension_numbers<[1], [0], [0], [1], [0, 0, 1, 1], [], []>} : vector<16x16xf32>, vector<16x16xf32>, vector<16x16xf32> -> vector<16x16xf32>
    %64 = tpu.concatenate %35, %39, %43, %47, %51, %55, %59, %63 in 0 : vector<16x16xf32>, vector<16x16xf32>, vector<16x16xf32>, vector<16x16xf32>, vector<16x16xf32>, vector<16x16xf32>, vector<16x16xf32>, vector<16x16xf32> -> vector<128x16xf32>
    %c1_58 = arith.constant 1 : index
    %c0_59 = arith.constant 0 : index
    %c0_60 = arith.constant 0 : index
    %65 = vector.load %arg5[%c1_58, %c0_59, %c0_60] : memref<4x16x16xf32, #tpu.memory_space<vmem>>, vector<1x16x16xf32>
    %66 = vector.shape_cast %65 : vector<1x16x16xf32> to vector<16x16xf32>
    %c1_61 = arith.constant 1 : index
    %c0_62 = arith.constant 0 : index
    %67 = vector.load %arg7[%c1_61, %c0_62] : memref<16x128xf32, #tpu.memory_space<vmem>>, vector<1x16xf32>
    %cst_63 = arith.constant dense<0.000000e+00> : vector<128x16xf32>
    %68 = tpu.matmul %64, %66, %cst_63 {dimension_numbers = #tpu.dot_dimension_numbers<[1], [0], [0], [1], [0, 0, 1, 1], [], []>} : vector<128x16xf32>, vector<16x16xf32>, vector<128x16xf32> -> vector<128x16xf32>
    %69 = vector.broadcast %67 : vector<1x16xf32> to vector<128x16xf32>
    %70 = arith.addf %68, %69 : vector<128x16xf32>
    %cst_64 = arith.constant 0.000000e+00 : f32
    %71 = vector.broadcast %cst_64 : f32 to vector<128x16xf32>
    %72 = arith.cmpf ogt, %70, %71 : vector<128x16xf32>
    %cst_65 = arith.constant 0.000000e+00 : f32
    %73 = vector.broadcast %cst_65 : f32 to vector<128x16xf32>
    %74 = arith.minimumf %70, %73 : vector<128x16xf32>
    %75 = math.exp %74 : vector<128x16xf32>
    %cst_66 = arith.constant 1.000000e+00 : f32
    %76 = vector.broadcast %cst_66 : f32 to vector<128x16xf32>
    %77 = arith.subf %75, %76 : vector<128x16xf32>
    %78 = arith.select %72, %70, %77 : vector<128x16xi1>, vector<128x16xf32>
    %cst_67 = arith.constant dense<0.000000e+00> : vector<8x16xf32>
    %79 = tpu.matmul %0, %78, %cst_67 {dimension_numbers = #tpu.dot_dimension_numbers<[1], [0], [0], [1], [0, 0, 1, 1], [], []>} : vector<8x128xf32>, vector<128x16xf32>, vector<8x16xf32> -> vector<8x16xf32>
    %c0_68 = arith.constant 0 : index
    %c0_69 = arith.constant 0 : index
    %c0_70 = arith.constant 0 : index
    %80 = vector.load %arg2[%c0_68, %c0_69, %c0_70] : memref<8x16x16xf32, #tpu.memory_space<vmem>>, vector<1x16x16xf32>
    %81 = vector.shape_cast %80 : vector<1x16x16xf32> to vector<16x16xf32>
    %c1_71 = arith.constant 1 : index
    %c0_72 = arith.constant 0 : index
    %c0_73 = arith.constant 0 : index
    %82 = vector.load %arg2[%c1_71, %c0_72, %c0_73] : memref<8x16x16xf32, #tpu.memory_space<vmem>>, vector<1x16x16xf32>
    %83 = vector.shape_cast %82 : vector<1x16x16xf32> to vector<16x16xf32>
    %c2_74 = arith.constant 2 : index
    %c0_75 = arith.constant 0 : index
    %c0_76 = arith.constant 0 : index
    %84 = vector.load %arg2[%c2_74, %c0_75, %c0_76] : memref<8x16x16xf32, #tpu.memory_space<vmem>>, vector<1x16x16xf32>
    %85 = vector.shape_cast %84 : vector<1x16x16xf32> to vector<16x16xf32>
    %c3_77 = arith.constant 3 : index
    %c0_78 = arith.constant 0 : index
    %c0_79 = arith.constant 0 : index
    %86 = vector.load %arg2[%c3_77, %c0_78, %c0_79] : memref<8x16x16xf32, #tpu.memory_space<vmem>>, vector<1x16x16xf32>
    %87 = vector.shape_cast %86 : vector<1x16x16xf32> to vector<16x16xf32>
    %c4_80 = arith.constant 4 : index
    %c0_81 = arith.constant 0 : index
    %c0_82 = arith.constant 0 : index
    %88 = vector.load %arg2[%c4_80, %c0_81, %c0_82] : memref<8x16x16xf32, #tpu.memory_space<vmem>>, vector<1x16x16xf32>
    %89 = vector.shape_cast %88 : vector<1x16x16xf32> to vector<16x16xf32>
    %c5_83 = arith.constant 5 : index
    %c0_84 = arith.constant 0 : index
    %c0_85 = arith.constant 0 : index
    %90 = vector.load %arg2[%c5_83, %c0_84, %c0_85] : memref<8x16x16xf32, #tpu.memory_space<vmem>>, vector<1x16x16xf32>
    %91 = vector.shape_cast %90 : vector<1x16x16xf32> to vector<16x16xf32>
    %c6_86 = arith.constant 6 : index
    %c0_87 = arith.constant 0 : index
    %c0_88 = arith.constant 0 : index
    %92 = vector.load %arg2[%c6_86, %c0_87, %c0_88] : memref<8x16x16xf32, #tpu.memory_space<vmem>>, vector<1x16x16xf32>
    %93 = vector.shape_cast %92 : vector<1x16x16xf32> to vector<16x16xf32>
    %c7_89 = arith.constant 7 : index
    %c0_90 = arith.constant 0 : index
    %c0_91 = arith.constant 0 : index
    %94 = vector.load %arg2[%c7_89, %c0_90, %c0_91] : memref<8x16x16xf32, #tpu.memory_space<vmem>>, vector<1x16x16xf32>
    %95 = vector.shape_cast %94 : vector<1x16x16xf32> to vector<16x16xf32>
    %96 = tpu.concatenate %81, %83, %85, %87, %89, %91, %93, %95 in 0 : vector<16x16xf32>, vector<16x16xf32>, vector<16x16xf32>, vector<16x16xf32>, vector<16x16xf32>, vector<16x16xf32>, vector<16x16xf32>, vector<16x16xf32> -> vector<128x16xf32>
    %c2_92 = arith.constant 2 : index
    %c0_93 = arith.constant 0 : index
    %c0_94 = arith.constant 0 : index
    %97 = vector.load %arg5[%c2_92, %c0_93, %c0_94] : memref<4x16x16xf32, #tpu.memory_space<vmem>>, vector<1x16x16xf32>
    %98 = vector.shape_cast %97 : vector<1x16x16xf32> to vector<16x16xf32>
    %c2_95 = arith.constant 2 : index
    %c0_96 = arith.constant 0 : index
    %99 = vector.load %arg7[%c2_95, %c0_96] : memref<16x128xf32, #tpu.memory_space<vmem>>, vector<1x16xf32>
    %cst_97 = arith.constant dense<0.000000e+00> : vector<128x16xf32>
    %100 = tpu.matmul %96, %98, %cst_97 {dimension_numbers = #tpu.dot_dimension_numbers<[1], [0], [0], [1], [0, 0, 1, 1], [], []>} : vector<128x16xf32>, vector<16x16xf32>, vector<128x16xf32> -> vector<128x16xf32>
    %101 = vector.broadcast %99 : vector<1x16xf32> to vector<128x16xf32>
    %102 = arith.addf %100, %101 : vector<128x16xf32>
    %cst_98 = arith.constant 0.000000e+00 : f32
    %103 = vector.broadcast %cst_98 : f32 to vector<128x16xf32>
    %104 = arith.cmpf ogt, %102, %103 : vector<128x16xf32>
    %cst_99 = arith.constant 0.000000e+00 : f32
    %105 = vector.broadcast %cst_99 : f32 to vector<128x16xf32>
    %106 = arith.minimumf %102, %105 : vector<128x16xf32>
    %107 = math.exp %106 : vector<128x16xf32>
    %cst_100 = arith.constant 1.000000e+00 : f32
    %108 = vector.broadcast %cst_100 : f32 to vector<128x16xf32>
    %109 = arith.subf %107, %108 : vector<128x16xf32>
    %110 = arith.select %104, %102, %109 : vector<128x16xi1>, vector<128x16xf32>
    %c0_101 = arith.constant 0 : index
    %c0_102 = arith.constant 0 : index
    %c0_103 = arith.constant 0 : index
    %111 = vector.load %arg2[%c0_101, %c0_102, %c0_103] : memref<8x16x16xf32, #tpu.memory_space<vmem>>, vector<1x16x16xf32>
    %112 = vector.shape_cast %111 : vector<1x16x16xf32> to vector<16x16xf32>
    %113 = vector.extract_strided_slice %110 {offsets = [0, 0], sizes = [16, 16], strides = [1, 1]} : vector<128x16xf32> to vector<16x16xf32>
    %cst_104 = arith.constant dense<0.000000e+00> : vector<16x16xf32>
    %114 = tpu.matmul %112, %113, %cst_104 {dimension_numbers = #tpu.dot_dimension_numbers<[1], [0], [0], [1], [0, 0, 1, 1], [], []>} : vector<16x16xf32>, vector<16x16xf32>, vector<16x16xf32> -> vector<16x16xf32>
    %c1_105 = arith.constant 1 : index
    %c0_106 = arith.constant 0 : index
    %c0_107 = arith.constant 0 : index
    %115 = vector.load %arg2[%c1_105, %c0_106, %c0_107] : memref<8x16x16xf32, #tpu.memory_space<vmem>>, vector<1x16x16xf32>
    %116 = vector.shape_cast %115 : vector<1x16x16xf32> to vector<16x16xf32>
    %117 = vector.extract_strided_slice %110 {offsets = [16, 0], sizes = [16, 16], strides = [1, 1]} : vector<128x16xf32> to vector<16x16xf32>
    %cst_108 = arith.constant dense<0.000000e+00> : vector<16x16xf32>
    %118 = tpu.matmul %116, %117, %cst_108 {dimension_numbers = #tpu.dot_dimension_numbers<[1], [0], [0], [1], [0, 0, 1, 1], [], []>} : vector<16x16xf32>, vector<16x16xf32>, vector<16x16xf32> -> vector<16x16xf32>
    %c2_109 = arith.constant 2 : index
    %c0_110 = arith.constant 0 : index
    %c0_111 = arith.constant 0 : index
    %119 = vector.load %arg2[%c2_109, %c0_110, %c0_111] : memref<8x16x16xf32, #tpu.memory_space<vmem>>, vector<1x16x16xf32>
    %120 = vector.shape_cast %119 : vector<1x16x16xf32> to vector<16x16xf32>
    %121 = vector.extract_strided_slice %110 {offsets = [32, 0], sizes = [16, 16], strides = [1, 1]} : vector<128x16xf32> to vector<16x16xf32>
    %cst_112 = arith.constant dense<0.000000e+00> : vector<16x16xf32>
    %122 = tpu.matmul %120, %121, %cst_112 {dimension_numbers = #tpu.dot_dimension_numbers<[1], [0], [0], [1], [0, 0, 1, 1], [], []>} : vector<16x16xf32>, vector<16x16xf32>, vector<16x16xf32> -> vector<16x16xf32>
    %c3_113 = arith.constant 3 : index
    %c0_114 = arith.constant 0 : index
    %c0_115 = arith.constant 0 : index
    %123 = vector.load %arg2[%c3_113, %c0_114, %c0_115] : memref<8x16x16xf32, #tpu.memory_space<vmem>>, vector<1x16x16xf32>
    %124 = vector.shape_cast %123 : vector<1x16x16xf32> to vector<16x16xf32>
    %125 = vector.extract_strided_slice %110 {offsets = [48, 0], sizes = [16, 16], strides = [1, 1]} : vector<128x16xf32> to vector<16x16xf32>
    %cst_116 = arith.constant dense<0.000000e+00> : vector<16x16xf32>
    %126 = tpu.matmul %124, %125, %cst_116 {dimension_numbers = #tpu.dot_dimension_numbers<[1], [0], [0], [1], [0, 0, 1, 1], [], []>} : vector<16x16xf32>, vector<16x16xf32>, vector<16x16xf32> -> vector<16x16xf32>
    %c4_117 = arith.constant 4 : index
    %c0_118 = arith.constant 0 : index
    %c0_119 = arith.constant 0 : index
    %127 = vector.load %arg2[%c4_117, %c0_118, %c0_119] : memref<8x16x16xf32, #tpu.memory_space<vmem>>, vector<1x16x16xf32>
    %128 = vector.shape_cast %127 : vector<1x16x16xf32> to vector<16x16xf32>
    %129 = vector.extract_strided_slice %110 {offsets = [64, 0], sizes = [16, 16], strides = [1, 1]} : vector<128x16xf32> to vector<16x16xf32>
    %cst_120 = arith.constant dense<0.000000e+00> : vector<16x16xf32>
    %130 = tpu.matmul %128, %129, %cst_120 {dimension_numbers = #tpu.dot_dimension_numbers<[1], [0], [0], [1], [0, 0, 1, 1], [], []>} : vector<16x16xf32>, vector<16x16xf32>, vector<16x16xf32> -> vector<16x16xf32>
    %c5_121 = arith.constant 5 : index
    %c0_122 = arith.constant 0 : index
    %c0_123 = arith.constant 0 : index
    %131 = vector.load %arg2[%c5_121, %c0_122, %c0_123] : memref<8x16x16xf32, #tpu.memory_space<vmem>>, vector<1x16x16xf32>
    %132 = vector.shape_cast %131 : vector<1x16x16xf32> to vector<16x16xf32>
    %133 = vector.extract_strided_slice %110 {offsets = [80, 0], sizes = [16, 16], strides = [1, 1]} : vector<128x16xf32> to vector<16x16xf32>
    %cst_124 = arith.constant dense<0.000000e+00> : vector<16x16xf32>
    %134 = tpu.matmul %132, %133, %cst_124 {dimension_numbers = #tpu.dot_dimension_numbers<[1], [0], [0], [1], [0, 0, 1, 1], [], []>} : vector<16x16xf32>, vector<16x16xf32>, vector<16x16xf32> -> vector<16x16xf32>
    %c6_125 = arith.constant 6 : index
    %c0_126 = arith.constant 0 : index
    %c0_127 = arith.constant 0 : index
    %135 = vector.load %arg2[%c6_125, %c0_126, %c0_127] : memref<8x16x16xf32, #tpu.memory_space<vmem>>, vector<1x16x16xf32>
    %136 = vector.shape_cast %135 : vector<1x16x16xf32> to vector<16x16xf32>
    %137 = vector.extract_strided_slice %110 {offsets = [96, 0], sizes = [16, 16], strides = [1, 1]} : vector<128x16xf32> to vector<16x16xf32>
    %cst_128 = arith.constant dense<0.000000e+00> : vector<16x16xf32>
    %138 = tpu.matmul %136, %137, %cst_128 {dimension_numbers = #tpu.dot_dimension_numbers<[1], [0], [0], [1], [0, 0, 1, 1], [], []>} : vector<16x16xf32>, vector<16x16xf32>, vector<16x16xf32> -> vector<16x16xf32>
    %c7_129 = arith.constant 7 : index
    %c0_130 = arith.constant 0 : index
    %c0_131 = arith.constant 0 : index
    %139 = vector.load %arg2[%c7_129, %c0_130, %c0_131] : memref<8x16x16xf32, #tpu.memory_space<vmem>>, vector<1x16x16xf32>
    %140 = vector.shape_cast %139 : vector<1x16x16xf32> to vector<16x16xf32>
    %141 = vector.extract_strided_slice %110 {offsets = [112, 0], sizes = [16, 16], strides = [1, 1]} : vector<128x16xf32> to vector<16x16xf32>
    %cst_132 = arith.constant dense<0.000000e+00> : vector<16x16xf32>
    %142 = tpu.matmul %140, %141, %cst_132 {dimension_numbers = #tpu.dot_dimension_numbers<[1], [0], [0], [1], [0, 0, 1, 1], [], []>} : vector<16x16xf32>, vector<16x16xf32>, vector<16x16xf32> -> vector<16x16xf32>
    %143 = tpu.concatenate %114, %118, %122, %126, %130, %134, %138, %142 in 0 : vector<16x16xf32>, vector<16x16xf32>, vector<16x16xf32>, vector<16x16xf32>, vector<16x16xf32>, vector<16x16xf32>, vector<16x16xf32>, vector<16x16xf32> -> vector<128x16xf32>
    %c3_133 = arith.constant 3 : index
    %c0_134 = arith.constant 0 : index
    %c0_135 = arith.constant 0 : index
    %144 = vector.load %arg5[%c3_133, %c0_134, %c0_135] : memref<4x16x16xf32, #tpu.memory_space<vmem>>, vector<1x16x16xf32>
    %145 = vector.shape_cast %144 : vector<1x16x16xf32> to vector<16x16xf32>
    %c3_136 = arith.constant 3 : index
    %c0_137 = arith.constant 0 : index
    %146 = vector.load %arg7[%c3_136, %c0_137] : memref<16x128xf32, #tpu.memory_space<vmem>>, vector<1x16xf32>
    %cst_138 = arith.constant dense<0.000000e+00> : vector<128x16xf32>
    %147 = tpu.matmul %143, %145, %cst_138 {dimension_numbers = #tpu.dot_dimension_numbers<[1], [0], [0], [1], [0, 0, 1, 1], [], []>} : vector<128x16xf32>, vector<16x16xf32>, vector<128x16xf32> -> vector<128x16xf32>
    %148 = vector.broadcast %146 : vector<1x16xf32> to vector<128x16xf32>
    %149 = arith.addf %147, %148 : vector<128x16xf32>
    %cst_139 = arith.constant 0.000000e+00 : f32
    %150 = vector.broadcast %cst_139 : f32 to vector<128x16xf32>
    %151 = arith.cmpf ogt, %149, %150 : vector<128x16xf32>
    %cst_140 = arith.constant 0.000000e+00 : f32
    %152 = vector.broadcast %cst_140 : f32 to vector<128x16xf32>
    %153 = arith.minimumf %149, %152 : vector<128x16xf32>
    %154 = math.exp %153 : vector<128x16xf32>
    %cst_141 = arith.constant 1.000000e+00 : f32
    %155 = vector.broadcast %cst_141 : f32 to vector<128x16xf32>
    %156 = arith.subf %154, %155 : vector<128x16xf32>
    %157 = arith.select %151, %149, %156 : vector<128x16xi1>, vector<128x16xf32>
    %cst_142 = arith.constant dense<0.000000e+00> : vector<8x16xf32>
    %158 = tpu.matmul %0, %157, %cst_142 {dimension_numbers = #tpu.dot_dimension_numbers<[1], [0], [0], [1], [0, 0, 1, 1], [], []>} : vector<8x128xf32>, vector<128x16xf32>, vector<8x16xf32> -> vector<8x16xf32>
    %159 = tpu.concatenate %79, %158 in 1 : vector<8x16xf32>, vector<8x16xf32> -> vector<8x32xf32>
    %c0_143 = arith.constant 0 : index
    %c0_144 = arith.constant 0 : index
    %160 = vector.load %arg8[%c0_143, %c0_144] : memref<312x128xbf16, #tpu.memory_space<vmem>>, vector<32x64xbf16>
    %161 = arith.truncf %159 : vector<8x32xf32> to vector<8x32xbf16>
    %cst_145 = arith.constant dense<0.000000e+00> : vector<8x64xf32>
    %162 = tpu.matmul %161, %160, %cst_145 {dimension_numbers = #tpu.dot_dimension_numbers<[1], [0], [0], [1], [0, 0, 1, 1], [], []>} : vector<8x32xbf16>, vector<32x64xbf16>, vector<8x64xf32> -> vector<8x64xf32>
    %c4_146 = arith.constant 4 : index
    %c0_147 = arith.constant 0 : index
    %163 = vector.load %arg7[%c4_146, %c0_147] : memref<16x128xf32, #tpu.memory_space<vmem>>, vector<1x64xf32>
    %164 = vector.broadcast %163 : vector<1x64xf32> to vector<8x64xf32>
    %165 = arith.addf %162, %164 : vector<8x64xf32>
    %cst_148 = arith.constant 0.000000e+00 : f32
    %166 = vector.broadcast %cst_148 : f32 to vector<8x64xf32>
    %167 = arith.cmpf ogt, %165, %166 : vector<8x64xf32>
    %cst_149 = arith.constant 0.000000e+00 : f32
    %168 = vector.broadcast %cst_149 : f32 to vector<8x64xf32>
    %169 = arith.minimumf %165, %168 : vector<8x64xf32>
    %170 = math.exp %169 : vector<8x64xf32>
    %cst_150 = arith.constant 1.000000e+00 : f32
    %171 = vector.broadcast %cst_150 : f32 to vector<8x64xf32>
    %172 = arith.subf %170, %171 : vector<8x64xf32>
    %173 = arith.select %167, %165, %172 : vector<8x64xi1>, vector<8x64xf32>
    %c32 = arith.constant 32 : index
    %c0_151 = arith.constant 0 : index
    %174 = vector.load %arg8[%c32, %c0_151] : memref<312x128xbf16, #tpu.memory_space<vmem>>, vector<64x128xbf16>
    %175 = arith.truncf %173 : vector<8x64xf32> to vector<8x64xbf16>
    %cst_152 = arith.constant dense<0.000000e+00> : vector<8x128xf32>
    %176 = tpu.matmul %175, %174, %cst_152 {dimension_numbers = #tpu.dot_dimension_numbers<[1], [0], [0], [1], [0, 0, 1, 1], [], []>} : vector<8x64xbf16>, vector<64x128xbf16>, vector<8x128xf32> -> vector<8x128xf32>
    %c5_153 = arith.constant 5 : index
    %c0_154 = arith.constant 0 : index
    %177 = vector.load %arg7[%c5_153, %c0_154] : memref<16x128xf32, #tpu.memory_space<vmem>>, vector<1x128xf32>
    %178 = vector.broadcast %177 : vector<1x128xf32> to vector<8x128xf32>
    %179 = arith.addf %176, %178 : vector<8x128xf32>
    %cst_155 = arith.constant 0.000000e+00 : f32
    %180 = vector.broadcast %cst_155 : f32 to vector<8x128xf32>
    %181 = arith.cmpf ogt, %179, %180 : vector<8x128xf32>
    %cst_156 = arith.constant 0.000000e+00 : f32
    %182 = vector.broadcast %cst_156 : f32 to vector<8x128xf32>
    %183 = arith.minimumf %179, %182 : vector<8x128xf32>
    %184 = math.exp %183 : vector<8x128xf32>
    %cst_157 = arith.constant 1.000000e+00 : f32
    %185 = vector.broadcast %cst_157 : f32 to vector<8x128xf32>
    %186 = arith.subf %184, %185 : vector<8x128xf32>
    %187 = arith.select %181, %179, %186 : vector<8x128xi1>, vector<8x128xf32>
    %c96 = arith.constant 96 : index
    %c0_158 = arith.constant 0 : index
    %188 = vector.load %arg8[%c96, %c0_158] : memref<312x128xbf16, #tpu.memory_space<vmem>>, vector<128x64xbf16>
    %189 = arith.truncf %187 : vector<8x128xf32> to vector<8x128xbf16>
    %cst_159 = arith.constant dense<0.000000e+00> : vector<8x64xf32>
    %190 = tpu.matmul %189, %188, %cst_159 {dimension_numbers = #tpu.dot_dimension_numbers<[1], [0], [0], [1], [0, 0, 1, 1], [], []>} : vector<8x128xbf16>, vector<128x64xbf16>, vector<8x64xf32> -> vector<8x64xf32>
    %c6_160 = arith.constant 6 : index
    %c0_161 = arith.constant 0 : index
    %191 = vector.load %arg7[%c6_160, %c0_161] : memref<16x128xf32, #tpu.memory_space<vmem>>, vector<1x64xf32>
    %192 = vector.broadcast %191 : vector<1x64xf32> to vector<8x64xf32>
    %193 = arith.addf %190, %192 : vector<8x64xf32>
    %cst_162 = arith.constant 0.000000e+00 : f32
    %194 = vector.broadcast %cst_162 : f32 to vector<8x64xf32>
    %195 = arith.cmpf ogt, %193, %194 : vector<8x64xf32>
    %cst_163 = arith.constant 0.000000e+00 : f32
    %196 = vector.broadcast %cst_163 : f32 to vector<8x64xf32>
    %197 = arith.minimumf %193, %196 : vector<8x64xf32>
    %198 = math.exp %197 : vector<8x64xf32>
    %cst_164 = arith.constant 1.000000e+00 : f32
    %199 = vector.broadcast %cst_164 : f32 to vector<8x64xf32>
    %200 = arith.subf %198, %199 : vector<8x64xf32>
    %201 = arith.select %195, %193, %200 : vector<8x64xi1>, vector<8x64xf32>
    %c224 = arith.constant 224 : index
    %c0_165 = arith.constant 0 : index
    %202 = vector.load %arg8[%c224, %c0_165] : memref<312x128xbf16, #tpu.memory_space<vmem>>, vector<64x24xbf16>
    %203 = arith.truncf %201 : vector<8x64xf32> to vector<8x64xbf16>
    %cst_166 = arith.constant dense<0.000000e+00> : vector<8x24xf32>
    %204 = tpu.matmul %203, %202, %cst_166 {dimension_numbers = #tpu.dot_dimension_numbers<[1], [0], [0], [1], [0, 0, 1, 1], [], []>} : vector<8x64xbf16>, vector<64x24xbf16>, vector<8x24xf32> -> vector<8x24xf32>
    %c7_167 = arith.constant 7 : index
    %c0_168 = arith.constant 0 : index
    %205 = vector.load %arg7[%c7_167, %c0_168] : memref<16x128xf32, #tpu.memory_space<vmem>>, vector<1x24xf32>
    %206 = vector.broadcast %205 : vector<1x24xf32> to vector<8x24xf32>
    %207 = arith.addf %204, %206 : vector<8x24xf32>
    %cst_169 = arith.constant 0.000000e+00 : f32
    %208 = vector.broadcast %cst_169 : f32 to vector<8x24xf32>
    %209 = arith.cmpf ogt, %207, %208 : vector<8x24xf32>
    %cst_170 = arith.constant 0.000000e+00 : f32
    %210 = vector.broadcast %cst_170 : f32 to vector<8x24xf32>
    %211 = arith.minimumf %207, %210 : vector<8x24xf32>
    %212 = math.exp %211 : vector<8x24xf32>
    %cst_171 = arith.constant 1.000000e+00 : f32
    %213 = vector.broadcast %cst_171 : f32 to vector<8x24xf32>
    %214 = arith.subf %212, %213 : vector<8x24xf32>
    %215 = arith.select %209, %207, %214 : vector<8x24xi1>, vector<8x24xf32>
    %c288 = arith.constant 288 : index
    %c0_172 = arith.constant 0 : index
    %216 = vector.load %arg8[%c288, %c0_172] : memref<312x128xbf16, #tpu.memory_space<vmem>>, vector<24x5xbf16>
    %217 = arith.truncf %215 : vector<8x24xf32> to vector<8x24xbf16>
    %cst_173 = arith.constant dense<0.000000e+00> : vector<8x5xf32>
    %218 = tpu.matmul %217, %216, %cst_173 {dimension_numbers = #tpu.dot_dimension_numbers<[1], [0], [0], [1], [0, 0, 1, 1], [], []>} : vector<8x24xbf16>, vector<24x5xbf16>, vector<8x5xf32> -> vector<8x5xf32>
    %c8 = arith.constant 8 : index
    %c0_174 = arith.constant 0 : index
    %219 = vector.load %arg7[%c8, %c0_174] : memref<16x128xf32, #tpu.memory_space<vmem>>, vector<1x5xf32>
    %220 = vector.broadcast %219 : vector<1x5xf32> to vector<8x5xf32>
    %221 = arith.addf %218, %220 : vector<8x5xf32>
    %222 = vector.extract_strided_slice %221 {offsets = [0, 0], sizes = [8, 4], strides = [1, 1]} : vector<8x5xf32> to vector<8x4xf32>
    %223 = vector.extract_strided_slice %221 {offsets = [0, 4], sizes = [8, 1], strides = [1, 1]} : vector<8x5xf32> to vector<8x1xf32>
    %cst_175 = arith.constant dense<0xFF800000> : vector<8xf32>
    %224 = vector.multi_reduction <maximumf>, %222, %cst_175 [1] : vector<8x4xf32> to vector<8xf32>
    %225 = vector.shape_cast %224 : vector<8xf32> to vector<8x1xf32>
    %226 = vector.broadcast %225 : vector<8x1xf32> to vector<8x4xf32>
    %227 = arith.subf %222, %226 : vector<8x4xf32>
    %228 = math.exp %227 : vector<8x4xf32>
    %cst_176 = arith.constant dense<0.000000e+00> : vector<8xf32>
    %229 = vector.multi_reduction <add>, %228, %cst_176 [1] : vector<8x4xf32> to vector<8xf32>
    %230 = vector.shape_cast %229 : vector<8xf32> to vector<8x1xf32>
    %231 = vector.broadcast %230 : vector<8x1xf32> to vector<8x4xf32>
    %232 = arith.divf %228, %231 : vector<8x4xf32>
    %cst_177 = arith.constant 0.000000e+00 : f32
    %233 = vector.broadcast %cst_177 : f32 to vector<8x1xf32>
    %234 = arith.subf %233, %223 : vector<8x1xf32>
    %235 = math.exp %234 : vector<8x1xf32>
    %cst_178 = arith.constant 1.000000e+00 : f32
    %236 = vector.broadcast %cst_178 : f32 to vector<8x1xf32>
    %237 = arith.addf %236, %235 : vector<8x1xf32>
    %cst_179 = arith.constant 1.000000e+00 : f32
    %238 = vector.broadcast %cst_179 : f32 to vector<8x1xf32>
    %239 = arith.divf %238, %237 : vector<8x1xf32>
    %c0_180 = arith.constant 0 : index
    %c0_181 = arith.constant 0 : index
    %240 = vector.load %arg3[%c0_180, %c0_181] : memref<8x4xf32, #tpu.memory_space<vmem>>, vector<8x4xf32>
    %c0_182 = arith.constant 0 : index
    %c0_183 = arith.constant 0 : index
    %241 = vector.load %arg4[%c0_182, %c0_183] : memref<8x1xf32, #tpu.memory_space<vmem>>, vector<8x1xf32>
    %cst_184 = arith.constant 0.000000e+00 : f32
    %242 = vector.broadcast %cst_184 : f32 to vector<8x4xf32>
    %243 = arith.maximumf %240, %242 : vector<8x4xf32>
    %244 = arith.mulf %240, %232 : vector<8x4xf32>
    %245 = arith.subf %243, %244 : vector<8x4xf32>
    %246 = math.absf %240 : vector<8x4xf32>
    %cst_185 = arith.constant 0.000000e+00 : f32
    %247 = vector.broadcast %cst_185 : f32 to vector<8x4xf32>
    %248 = arith.subf %247, %246 : vector<8x4xf32>
    %249 = math.exp %248 : vector<8x4xf32>
    %cst_186 = arith.constant 1.000000e+00 : f32
    %250 = vector.broadcast %cst_186 : f32 to vector<8x4xf32>
    %251 = arith.addf %250, %249 : vector<8x4xf32>
    %252 = math.log %251 : vector<8x4xf32>
    %253 = arith.addf %245, %252 : vector<8x4xf32>
    %cst_187 = arith.constant dense<0.000000e+00> : vector<8xf32>
    %254 = vector.multi_reduction <add>, %253, %cst_187 [1] : vector<8x4xf32> to vector<8xf32>
    %255 = vector.shape_cast %254 : vector<8xf32> to vector<8x1xf32>
    %cst_188 = arith.constant 4.000000e+00 : f32
    %256 = vector.broadcast %cst_188 : f32 to vector<8x1xf32>
    %257 = arith.divf %255, %256 : vector<8x1xf32>
    %cst_189 = arith.constant 5.000000e+00 : f32
    %258 = vector.broadcast %cst_189 : f32 to vector<8x1xf32>
    %259 = arith.mulf %258, %257 : vector<8x1xf32>
    %260 = arith.subf %241, %239 : vector<8x1xf32>
    %261 = arith.mulf %260, %260 : vector<8x1xf32>
    %262 = arith.addf %259, %261 : vector<8x1xf32>
    %cst_190 = arith.constant 0.000000e+00 : f32
    %263 = vector.broadcast %cst_190 : f32 to vector<8x122xf32>
    %264 = tpu.concatenate %232, %239, %262, %263 in 1 : vector<8x4xf32>, vector<8x1xf32>, vector<8x1xf32>, vector<8x122xf32> -> vector<8x128xf32>
    %c0_191 = arith.constant 0 : index
    %c0_192 = arith.constant 0 : index
    %265 = vector.load %arg9[%c0_191, %c0_192] : memref<8x128xf32, #tpu.memory_space<vmem>>, vector<8x128xf32>
    tpu.vector_store %arg9[%c0_191, %c0_192], %264 {strides = array<i32>} : memref<8x128xf32, #tpu.memory_space<vmem>>, vector<8x128xf32>,
    return
  }
  func.func @transform_0(%arg0: i32) -> (i32, i32, i32) {
    %c0_i32 = arith.constant 0 : i32
    %c0_i32_0 = arith.constant 0 : i32
    %c0_i32_1 = arith.constant 0 : i32
    return %arg0, %c0_i32, %c0_i32_0 : i32, i32, i32
  }
  func.func @transform_1(%arg0: i32) -> (i32, i32, i32) {
    %c0_i32 = arith.constant 0 : i32
    %c0_i32_0 = arith.constant 0 : i32
    %c0_i32_1 = arith.constant 0 : i32
    return %arg0, %c0_i32, %c0_i32_0 : i32, i32, i32
  }
  func.func @transform_2(%arg0: i32) -> (i32, i32) {
    %c0_i32 = arith.constant 0 : i32
    %c0_i32_0 = arith.constant 0 : i32
    return %arg0, %c0_i32 : i32, i32
  }
  func.func @transform_3(%arg0: i32) -> (i32, i32) {
    %c0_i32 = arith.constant 0 : i32
    %c0_i32_0 = arith.constant 0 : i32
    return %arg0, %c0_i32 : i32, i32
  }
  func.func @transform_4(%arg0: i32) -> (i32, i32, i32) {
    %c0_i32 = arith.constant 0 : i32
    %c0_i32_0 = arith.constant 0 : i32
    %c0_i32_1 = arith.constant 0 : i32
    %c0_i32_2 = arith.constant 0 : i32
    return %c0_i32, %c0_i32_0, %c0_i32_1 : i32, i32, i32
  }
  func.func @transform_5(%arg0: i32) -> (i32, i32) {
    %c0_i32 = arith.constant 0 : i32
    %c0_i32_0 = arith.constant 0 : i32
    %c0_i32_1 = arith.constant 0 : i32
    return %c0_i32, %c0_i32_0 : i32, i32
  }
  func.func @transform_6(%arg0: i32) -> (i32, i32) {
    %c0_i32 = arith.constant 0 : i32
    %c0_i32_0 = arith.constant 0 : i32
    %c0_i32_1 = arith.constant 0 : i32
    return %c0_i32, %c0_i32_0 : i32, i32
  }
  func.func @transform_7(%arg0: i32) -> (i32, i32) {
    %c0_i32 = arith.constant 0 : i32
    %c0_i32_0 = arith.constant 0 : i32
    %c0_i32_1 = arith.constant 0 : i32
    return %c0_i32, %c0_i32_0 : i32, i32
  }
  func.func @transform_8(%arg0: i32) -> (i32, i32) {
    %c0_i32 = arith.constant 0 : i32
    %c0_i32_0 = arith.constant 0 : i32
    return %arg0, %c0_i32 : i32, i32
  }
}

</mosaic_0001>

<llo_original>
// kernel: _forward_batched_impl.1
$region0: #{_forward_batched_impl.1}
  #allocation0 [shape = 'u32[]', space=smem, size = 0x4, offset = 0x4, fixed_abs, tag = 'smem constant byte address 0x4 - core index']
  #allocation1 [shape = 'u32[72,128]{1,0:T(1,128)}', space=vmem, size = 0x9000, scoped, tag = 'internal scratch']
  %s0 = inlined_call_operand.hbm [shape: f32[16,16,16], index: 0, kind: input, shape index: {}]
  %s1 = inlined_call_operand.hbm [shape: f32[16,16,16], index: 1, kind: input, shape index: {}]
  %s2 = inlined_call_operand.vmem [shape: f32[16,4], index: 2, kind: input, shape index: {}]
  %s3 = inlined_call_operand.vmem [shape: f32[16,1], index: 3, kind: input, shape index: {}]
  %s4 = inlined_call_operand.hbm [shape: f32[4,16,16], index: 4, kind: input, shape index: {}]
  %s5 = inlined_call_operand.vmem [shape: f32[8,128], index: 5, kind: input, shape index: {}]
  %s6 = inlined_call_operand.vmem [shape: f32[16,128], index: 6, kind: input, shape index: {}]
  %s7 = inlined_call_operand.hbm [shape: bf16[312,128], index: 7, kind: input, shape index: {}]
  %s8 = inlined_call_operand.vmem [shape: f32[16,128], index: 8, kind: output, shape index: {}]
  %s9 = sld [smem:[#allocation0]]
  $region81: #{_forward_batched_impl.1} parent=0
    _
  %s11 = ssub.s32 1, %s9
  %s12 = scalar_select 0, %s11, %s9
  $region1: #{_forward_batched_impl.1} parent=0
    #allocation2 [shape = 'u8[131072]{0}', space=vmem, size = 0x20000, scoped, tag = 'input window, operand 0']
    #allocation3 [shape = 's32[2]{0}', space=sflag, size = 0x8, scoped, tag = 'scoped memory for _forward_batched_impl.1']
    #allocation4 [shape = 'u8[131072]{0}', space=vmem, size = 0x20000, scoped, tag = 'input window, operand 1']
    #allocation5 [shape = 's32[2]{0}', space=sflag, size = 0x8, scoped, tag = 'scoped memory for _forward_batched_impl.1']
    #allocation6 [shape = 'u8[32768]{0}', space=vmem, size = 0x8000, scoped, tag = 'input window, operand 4, single buffered']
    #allocation7 [shape = 'u8[79872]{0}', space=vmem, size = 0x13800, scoped, tag = 'input window, operand 7, single buffered']
    #allocation8 [shape = 's32[1]{0}', space=sflag, size = 0x4, scoped, tag = 'scoped memory for _forward_batched_impl.1']
    %13 = vsyncpa [#allocation3], 0
    %s14 = scalar_lea.sflag [#allocation3], 1
    %15 = vsyncpa %s14, 0
    %16 = vsyncpa [#allocation5], 0
    %s17 = scalar_lea.sflag [#allocation5], 1
    %18 = vsyncpa %s17, 0
    %19 = vsyncpa [#allocation8], 0
    loop: start=0, step=1, limit=4
    $region2: #{_forward_batched_impl.1} parent=1 // loop_pre_header
      _
    $region3: #{_forward_batched_impl.1} parent=1 // loop_header
      %s21 = sphi 0, %s25
      %p22 = scmp.ge.s32.totalorder %s21, 4
      %s31 = sphi 0, %s33
      %s34 = sphi 0, %s31
      %s35 = sphi 0, %s34
      %s51 = sphi 0, %s35
      %s57 = sphi 0, %s59
      %s60 = sphi 0, %s57
      %s61 = sphi 0, %s60
      %s77 = sphi 0, %s61
      %s83 = sphi 0, %s85
      %s86 = sphi 0, %s83
      %s87 = sphi 0, %s86
      %s103 = sphi 0, %s87
      %s109 = sphi 0, %s111
      %s112 = sphi 0, %s109
      %s113 = sphi 0, %s112
      %s129 = sphi 0, %s113
      %s133 = sphi 0, %s133
      %s135 = sphi 0, %s133
      %s136 = sphi 0, %s135
      %s150 = sphi 0, %s136
      %s154 = sphi 0, %s154
      %s156 = sphi 0, %s154
      %s157 = sphi 0, %s156
      %s171 = sphi 0, %s157
      %s175 = sphi 0, %s175
      %s177 = sphi 0, %s175
      %s178 = sphi 0, %s177
      %s192 = sphi 0, %s178
      %s196 = sphi 0, %s196
      %s198 = sphi 0, %s196
      %s199 = sphi 0, %s198
      %s213 = sphi 0, %s199
      %s219 = sphi 0, %s221
      %s222 = sphi 0, %s219
      %s223 = sphi 0, %s222
      %s239 = sphi 0, %s223
    $region4: #{_forward_batched_impl.1} parent=1 // loop_header_branch
      %24 = sbr.rel (%p22) target = $region8
    $region5: #{_forward_batched_impl.1} parent=1 // loop_body
      %s26 = ssub.s32 %s21, 1
      %s27 = ssub.s32 %s21, 2
      %s28 = sadd.s32 %s21, 1
      %s29 = ssub.s32 %s21, %s28
      %p30 = scmp.eq.s32.totalorder %s29, 0
      %s32 = sadd.s32 %s31, 1
      %s33 = scalar_select %p30, %s31, %s32
      %p36 = pneg %p30
      %p37 = scmp.eq.s32.totalorder %s21, 1
      %p38 = por %p36, %p37
      %p39 = scmp.ne.s32.totalorder %s31, %s34
      %p40 = scmp.eq.s32.totalorder %s21, 0
      %p41 = por %p39, %p40
      %p42 = scmp.ne.s32.totalorder %s31, %s34
      %p43 = scmp.eq.s32.totalorder %s26, 1
      %p44 = por %p42, %p43
      %p45 = scmp.ne.s32.totalorder %s34, %s35
      %p46 = scmp.eq.s32.totalorder %s26, 0
      %p47 = por %p45, %p46
      %p48 = scmp.ne.s32.totalorder %s34, %s35
      %p49 = scmp.eq.s32.totalorder %s27, 1
      %p50 = por %p48, %p49
      %p52 = scmp.ne.s32.totalorder %s35, %s51
      %p53 = scmp.eq.s32.totalorder %s27, 0
      %p54 = por %p52, %p53
      %s55 = ssub.s32 %s21, %s28
      %p56 = scmp.eq.s32.totalorder %s55, 0
      %s58 = sadd.s32 %s57, 1
      %s59 = scalar_select %p56, %s57, %s58
      %p62 = pneg %p56
      %p63 = scmp.eq.s32.totalorder %s21, 1
      %p64 = por %p62, %p63
      %p65 = scmp.ne.s32.totalorder %s57, %s60
      %p66 = scmp.eq.s32.totalorder %s21, 0
      %p67 = por %p65, %p66
      %p68 = scmp.ne.s32.totalorder %s57, %s60
      %p69 = scmp.eq.s32.totalorder %s26, 1
      %p70 = por %p68, %p69
      %p71 = scmp.ne.s32.totalorder %s60, %s61
      %p72 = scmp.eq.s32.totalorder %s26, 0
      %p73 = por %p71, %p72
      %p74 = scmp.ne.s32.totalorder %s60, %s61
      %p75 = scmp.eq.s32.totalorder %s27, 1
      %p76 = por %p74, %p75
      %p78 = scmp.ne.s32.totalorder %s61, %s77
      %p79 = scmp.eq.s32.totalorder %s27, 0
      %p80 = por %p78, %p79
      %s81 = ssub.s32 %s21, %s28
      %p82 = scmp.eq.s32.totalorder %s81, 0
      %s84 = sadd.s32 %s83, 1
      %s85 = scalar_select %p82, %s83, %s84
      %p88 = pneg %p82
      %p89 = scmp.eq.s32.totalorder %s21, 1
      %p90 = por %p88, %p89
      %p91 = scmp.ne.s32.totalorder %s83, %s86
      %p92 = scmp.eq.s32.totalorder %s21, 0
      %p93 = por %p91, %p92
      %p94 = scmp.ne.s32.totalorder %s83, %s86
      %p95 = scmp.eq.s32.totalorder %s26, 1
      %p96 = por %p94, %p95
      %p97 = scmp.ne.s32.totalorder %s86, %s87
      %p98 = scmp.eq.s32.totalorder %s26, 0
      %p99 = por %p97, %p98
      %p100 = scmp.ne.s32.totalorder %s86, %s87
      %p101 = scmp.eq.s32.totalorder %s27, 1
      %p102 = por %p100, %p101
      %p104 = scmp.ne.s32.totalorder %s87, %s103
      %p105 = scmp.eq.s32.totalorder %s27, 0
      %p106 = por %p104, %p105
      %s107 = ssub.s32 %s21, %s28
      %p108 = scmp.eq.s32.totalorder %s107, 0
      %s110 = sadd.s32 %s109, 1
      %s111 = scalar_select %p108, %s109, %s110
      %p114 = pneg %p108
      %p115 = scmp.eq.s32.totalorder %s21, 1
      %p116 = por %p114, %p115
      %p117 = scmp.ne.s32.totalorder %s109, %s112
      %p118 = scmp.eq.s32.totalorder %s21, 0
      %p119 = por %p117, %p118
      %p120 = scmp.ne.s32.totalorder %s109, %s112
      %p121 = scmp.eq.s32.totalorder %s26, 1
      %p122 = por %p120, %p121
      %p123 = scmp.ne.s32.totalorder %s112, %s113
      %p124 = scmp.eq.s32.totalorder %s26, 0
      %p125 = por %p123, %p124
      %p126 = scmp.ne.s32.totalorder %s112, %s113
      %p127 = scmp.eq.s32.totalorder %s27, 1
      %p128 = por %p126, %p127
      %p130 = scmp.ne.s32.totalorder %s113, %s129
      %p131 = scmp.eq.s32.totalorder %s27, 0
      %p132 = por %p130, %p131
      %s134 = sadd.s32 %s133, 1
      %p137 = scmp.eq.s32.totalorder %s21, 1
      %p138 = scmp.ne.s32.totalorder %s133, %s135
      %p139 = scmp.eq.s32.totalorder %s21, 0
      %p140 = por %p138, %p139
      %p141 = scmp.ne.s32.totalorder %s133, %s135
      %p142 = scmp.eq.s32.totalorder %s26, 1
      %p143 = por %p141, %p142
      %p144 = scmp.ne.s32.totalorder %s135, %s136
      %p145 = scmp.eq.s32.totalorder %s26, 0
      %p146 = por %p144, %p145
      %p147 = scmp.ne.s32.totalorder %s135, %s136
      %p148 = scmp.eq.s32.totalorder %s27, 1
      %p149 = por %p147, %p148
      %p151 = scmp.ne.s32.totalorder %s136, %s150
      %p152 = scmp.eq.s32.totalorder %s27, 0
      %p153 = por %p151, %p152
      %s155 = sadd.s32 %s154, 1
      %p158 = scmp.eq.s32.totalorder %s21, 1
      %p159 = scmp.ne.s32.totalorder %s154, %s156
      %p160 = scmp.eq.s32.totalorder %s21, 0
      %p161 = por %p159, %p160
      %p162 = scmp.ne.s32.totalorder %s154, %s156
      %p163 = scmp.eq.s32.totalorder %s26, 1
      %p164 = por %p162, %p163
      %p165 = scmp.ne.s32.totalorder %s156, %s157
      %p166 = scmp.eq.s32.totalorder %s26, 0
      %p167 = por %p165, %p166
      %p168 = scmp.ne.s32.totalorder %s156, %s157
      %p169 = scmp.eq.s32.totalorder %s27, 1
      %p170 = por %p168, %p169
      %p172 = scmp.ne.s32.totalorder %s157, %s171
      %p173 = scmp.eq.s32.totalorder %s27, 0
      %p174 = por %p172, %p173
      %s176 = sadd.s32 %s175, 1
      %p179 = scmp.eq.s32.totalorder %s21, 1
      %p180 = scmp.ne.s32.totalorder %s175, %s177
      %p181 = scmp.eq.s32.totalorder %s21, 0
      %p182 = por %p180, %p181
      %p183 = scmp.ne.s32.totalorder %s175, %s177
      %p184 = scmp.eq.s32.totalorder %s26, 1
      %p185 = por %p183, %p184
      %p186 = scmp.ne.s32.totalorder %s177, %s178
      %p187 = scmp.eq.s32.totalorder %s26, 0
      %p188 = por %p186, %p187
      %p189 = scmp.ne.s32.totalorder %s177, %s178
      %p190 = scmp.eq.s32.totalorder %s27, 1
      %p191 = por %p189, %p190
      %p193 = scmp.ne.s32.totalorder %s178, %s192
      %p194 = scmp.eq.s32.totalorder %s27, 0
      %p195 = por %p193, %p194
      %s197 = sadd.s32 %s196, 1
      %p200 = scmp.eq.s32.totalorder %s21, 1
      %p201 = scmp.ne.s32.totalorder %s196, %s198
      %p202 = scmp.eq.s32.totalorder %s21, 0
      %p203 = por %p201, %p202
      %p204 = scmp.ne.s32.totalorder %s196, %s198
      %p205 = scmp.eq.s32.totalorder %s26, 1
      %p206 = por %p204, %p205
      %p207 = scmp.ne.s32.totalorder %s198, %s199
      %p208 = scmp.eq.s32.totalorder %s26, 0
      %p209 = por %p207, %p208
      %p210 = scmp.ne.s32.totalorder %s198, %s199
      %p211 = scmp.eq.s32.totalorder %s27, 1
      %p212 = por %p210, %p211
      %p214 = scmp.ne.s32.totalorder %s199, %s213
      %p215 = scmp.eq.s32.totalorder %s27, 0
      %p216 = por %p214, %p215
      %s217 = ssub.s32 %s21, %s28
      %p218 = scmp.eq.s32.totalorder %s217, 0
      %s220 = sadd.s32 %s219, 1
      %s221 = scalar_select %p218, %s219, %s220
      %p224 = pneg %p218
      %p225 = scmp.eq.s32.totalorder %s21, 1
      %p226 = por %p224, %p225
      %p227 = scmp.ne.s32.totalorder %s219, %s222
      %p228 = scmp.eq.s32.totalorder %s21, 0
      %p229 = por %p227, %p228
      %p230 = scmp.ne.s32.totalorder %s219, %s222
      %p231 = scmp.eq.s32.totalorder %s26, 1
      %p232 = por %p230, %p231
      %p233 = scmp.ne.s32.totalorder %s222, %s223
      %p234 = scmp.eq.s32.totalorder %s26, 0
      %p235 = por %p233, %p234
      %p236 = scmp.ne.s32.totalorder %s222, %s223
      %p237 = scmp.eq.s32.totalorder %s27, 1
      %p238 = por %p236, %p237
      %p240 = scmp.ne.s32.totalorder %s223, %s239
      %p241 = scmp.eq.s32.totalorder %s27, 0
      %p242 = por %p240, %p241
      %p243 = scmp.le.s32.totalorder 1, %s21
      %p244 = scmp.lt.s32.totalorder %s21, 3
      %p245 = pnand %p243, %p244
      %p246 = pneg %p245
      // Predicated region
      $region9: #{_forward_batched_impl.1} parent=5 // pred_check
        _
      $region10: #{_forward_batched_impl.1} parent=5 // pred_check_branch
        %248 = sbr.rel (%p245) target = $region12
      $region11: #{_forward_batched_impl.1} parent=5 // pred_region
        %s249 = ssub.s32 %s21, 1
        // Predicated region
        $region13: #{_forward_batched_impl.1} parent=11 // pred_check
          %p250 = pneg %p146
        $region14: #{_forward_batched_impl.1} parent=11 // pred_check_branch
          %252 = sbr.rel (%p250) target = $region16
        $region15: #{_forward_batched_impl.1} parent=11 // pred_region
          %254 = vsyncadd [#allocation5], 0
          %s255 = sshll.u32 %s4, 4
          %s256 = int_to_ptr.hbm [resolvable:$true] %s255
          %s257 = sshll.u32 [#allocation6], 4
          %s258 = int_to_ptr.vmem [resolvable:$true] %s257
          %263 = dma.hbm_to_vmem [thread:$0]  %s256, 1024, %s258, [#allocation5], 128, 128, 8
        $region16: #{_forward_batched_impl.1} parent=11 // pred_fallthru
          _
        // Predicated region
        $region17: #{_forward_batched_impl.1} parent=11 // pred_check
          %p264 = pneg %p167
        $region18: #{_forward_batched_impl.1} parent=11 // pred_check_branch
          %266 = sbr.rel (%p264) target = $region20
        $region19: #{_forward_batched_impl.1} parent=11 // pred_region
          _
        $region20: #{_forward_batched_impl.1} parent=11 // pred_fallthru
          _
        // Predicated region
        $region21: #{_forward_batched_impl.1} parent=11 // pred_check
          %p267 = pneg %p188
        $region22: #{_forward_batched_impl.1} parent=11 // pred_check_branch
          %269 = sbr.rel (%p267) target = $region24
        $region23: #{_forward_batched_impl.1} parent=11 // pred_region
          _
        $region24: #{_forward_batched_impl.1} parent=11 // pred_fallthru
          _
        // Predicated region
        $region25: #{_forward_batched_impl.1} parent=11 // pred_check
          %p270 = pneg %p209
        $region26: #{_forward_batched_impl.1} parent=11 // pred_check_branch
          %272 = sbr.rel (%p270) target = $region28
        $region27: #{_forward_batched_impl.1} parent=11 // pred_region
          %274 = vsyncadd [#allocation8], 0
          %s275 = sshll.u32 %s7, 4
          %s276 = int_to_ptr.hbm [resolvable:$true] %s275
          %s277 = sshll.u32 [#allocation7], 4
          %s278 = int_to_ptr.vmem [resolvable:$true] %s277
          %283 = dma.hbm_to_vmem [thread:$0]  %s276, 2496, %s278, [#allocation8], 64, 64, 4
        $region28: #{_forward_batched_impl.1} parent=11 // pred_fallthru
          _
      $region12: #{_forward_batched_impl.1} parent=5 // pred_fallthru
        _
      %p284 = scmp.lt.s32.totalorder %s21, 2
      // Predicated region
      $region29: #{_forward_batched_impl.1} parent=5 // pred_check
        %p285 = pneg %p284
      $region30: #{_forward_batched_impl.1} parent=5 // pred_check_branch
        %287 = sbr.rel (%p285) target = $region32
      $region31: #{_forward_batched_impl.1} parent=5 // pred_region
        // Predicated region
        $region33: #{_forward_batched_impl.1} parent=31 // pred_check
          %p288 = pneg %p41
        $region34: #{_forward_batched_impl.1} parent=31 // pred_check_branch
          %290 = sbr.rel (%p288) target = $region36
        $region35: #{_forward_batched_impl.1} parent=31 // pred_region
          %s291 = sand.u32 %s31, 1
          %s292 = scalar_lea.sflag [#allocation3], %s291
          %s293 = sand.u32 %s31, 1
          %s294 = smul.addr %s293, 128
          %s295 = scalar_lea.vmem [#allocation2], %s294
          %s296 = smul.u32 8, %s21
          %298 = vsyncadd %s292, 0
          %s299 = smul.addr %s296, 2
          %s300 = smul.addr %s299, 8
          %s301 = scalar_lea.hbm %s0, %s300
          %s302 = sshll.u32 %s301, 4
          %s303 = int_to_ptr.hbm [resolvable:$true] %s302
          %s304 = sshll.u32 %s295, 4
          %s305 = int_to_ptr.vmem [resolvable:$true] %s304
          %310 = dma.hbm_to_vmem [thread:$0]  %s303, 2048, %s305, %s292, 128, 128, 8
        $region36: #{_forward_batched_impl.1} parent=31 // pred_fallthru
          _
        // Predicated region
        $region37: #{_forward_batched_impl.1} parent=31 // pred_check
          %p311 = pneg %p67
        $region38: #{_forward_batched_impl.1} parent=31 // pred_check_branch
          %313 = sbr.rel (%p311) target = $region40
        $region39: #{_forward_batched_impl.1} parent=31 // pred_region
          %s314 = sand.u32 %s21, 1
          %s315 = scalar_lea.sflag [#allocation5], %s314
          %s316 = sand.u32 %s57, 1
          %s317 = smul.addr %s316, 128
          %s318 = scalar_lea.vmem [#allocation4], %s317
          %s319 = smul.u32 8, %s21
          %321 = vsyncadd %s315, 0
          %s322 = smul.addr %s319, 2
          %s323 = smul.addr %s322, 8
          %s324 = scalar_lea.hbm %s1, %s323
          %s325 = sshll.u32 %s324, 4
          %s326 = int_to_ptr.hbm [resolvable:$true] %s325
          %s327 = sshll.u32 %s318, 4
          %s328 = int_to_ptr.vmem [resolvable:$true] %s327
          %333 = dma.hbm_to_vmem [thread:$0]  %s326, 2048, %s328, %s315, 128, 128, 8
        $region40: #{_forward_batched_impl.1} parent=31 // pred_fallthru
          _
        // Predicated region
        $region41: #{_forward_batched_impl.1} parent=31 // pred_check
          %p334 = pneg %p93
        $region42: #{_forward_batched_impl.1} parent=31 // pred_check_branch
          %336 = sbr.rel (%p334) target = $region44
        $region43: #{_forward_batched_impl.1} parent=31 // pred_region
          %p337 = scmp.lt.s32.totalorder %s21, 1
          %s338 = scalar_select %p337, %s21, 1
          %s339 = smul.addr %s338, 8
          %s340 = scalar_lea.vmem %s2, %s339
        $region44: #{_forward_batched_impl.1} parent=31 // pred_fallthru
          _
        // Predicated region
        $region45: #{_forward_batched_impl.1} parent=31 // pred_check
          %p341 = pneg %p119
        $region46: #{_forward_batched_impl.1} parent=31 // pred_check_branch
          %343 = sbr.rel (%p341) target = $region48
        $region47: #{_forward_batched_impl.1} parent=31 // pred_region
          %p344 = scmp.lt.s32.totalorder %s21, 1
          %s345 = scalar_select %p344, %s21, 1
          %s346 = smul.addr %s345, 8
          %s347 = scalar_lea.vmem %s3, %s346
        $region48: #{_forward_batched_impl.1} parent=31 // pred_fallthru
          _
      $region32: #{_forward_batched_impl.1} parent=5 // pred_fallthru
        _
      %p348 = scmp.le.s32.totalorder 1, %s21
      %p349 = scmp.lt.s32.totalorder %s21, 3
      %p350 = pnand %p348, %p349
      %p351 = pneg %p350
      // Predicated region
      $region49: #{_forward_batched_impl.1} parent=5 // pred_check
        _
      $region50: #{_forward_batched_impl.1} parent=5 // pred_check_branch
        %353 = sbr.rel (%p350) target = $region52
      $region51: #{_forward_batched_impl.1} parent=5 // pred_region
        %s354 = ssub.s32 %s21, 1
        %s355 = sand.u32 %s34, 1
        %s356 = scalar_lea.sflag [#allocation3], %s355
        %s357 = sand.u32 %s34, 1
        %s358 = smul.addr %s357, 128
        %s359 = scalar_lea.vmem [#allocation2], %s358
        // Predicated region
        $region53: #{_forward_batched_impl.1} parent=51 // pred_check
          %p360 = pneg %p47
        $region54: #{_forward_batched_impl.1} parent=51 // pred_check_branch
          %362 = sbr.rel (%p360) target = $region56
        $region55: #{_forward_batched_impl.1} parent=51 // pred_region
          %364 = dma.done %s356, 2048
        $region56: #{_forward_batched_impl.1} parent=51 // pred_fallthru
          _
        %s365 = sand.u32 %s26, 1
        %s366 = scalar_lea.sflag [#allocation5], %s365
        %s367 = sand.u32 %s60, 1
        %s368 = smul.addr %s367, 128
        %s369 = scalar_lea.vmem [#allocation4], %s368
        // Predicated region
        $region57: #{_forward_batched_impl.1} parent=51 // pred_check
          %p370 = pneg %p73
        $region58: #{_forward_batched_impl.1} parent=51 // pred_check_branch
          %372 = sbr.rel (%p370) target = $region60
        $region59: #{_forward_batched_impl.1} parent=51 // pred_region
          %374 = dma.done %s366, 2048
        $region60: #{_forward_batched_impl.1} parent=51 // pred_fallthru
          _
        // Predicated region
        $region61: #{_forward_batched_impl.1} parent=51 // pred_check
          %p375 = pneg %p146
        $region62: #{_forward_batched_impl.1} parent=51 // pred_check_branch
          %377 = sbr.rel (%p375) target = $region64
        $region63: #{_forward_batched_impl.1} parent=51 // pred_region
          %379 = dma.done [#allocation5], 1024
        $region64: #{_forward_batched_impl.1} parent=51 // pred_fallthru
          _
        // Predicated region
        $region65: #{_forward_batched_impl.1} parent=51 // pred_check
          %p380 = pneg %p209
        $region66: #{_forward_batched_impl.1} parent=51 // pred_check_branch
          %382 = sbr.rel (%p380) target = $region68
        $region67: #{_forward_batched_impl.1} parent=51 // pred_region
          %384 = dma.done [#allocation8], 2496
        $region68: #{_forward_batched_impl.1} parent=51 // pred_fallthru
          _
        %s385 = sand.u32 %s34, 1
        %s386 = scalar_lea.sflag [#allocation3], %s385
        %s387 = sand.u32 %s34, 1
        %s388 = smul.addr %s387, 128
        %s389 = scalar_lea.vmem [#allocation2], %s388
        %p390 = pneg %p47
        %p391 = pneg %p44
        %s392 = sand.u32 %s26, 1
        %s393 = scalar_lea.sflag [#allocation5], %s392
        %s394 = sand.u32 %s60, 1
        %s395 = smul.addr %s394, 128
        %s396 = scalar_lea.vmem [#allocation4], %s395
        %p397 = pneg %p73
        %p398 = pneg %p70
        %p399 = scmp.lt.s32.totalorder %s26, 1
        %s400 = scalar_select %p399, %s26, 1
        %s401 = smul.addr %s400, 8
        %s402 = scalar_lea.vmem %s2, %s401
        %p403 = pneg %p99
        %p404 = pneg %p96
        %p405 = scmp.lt.s32.totalorder %s26, 1
        %s406 = scalar_select %p405, %s26, 1
        %s407 = smul.addr %s406, 8
        %s408 = scalar_lea.vmem %s3, %s407
        %p409 = pneg %p125
        %p410 = pneg %p122
        %p411 = pneg %p146
        %p412 = pneg %p143
        %p413 = pneg %p167
        %p414 = pneg %p164
        %p415 = pneg %p188
        %p416 = pneg %p185
        %p417 = pneg %p209
        %p418 = pneg %p206
        %p419 = pneg %p235
        %p420 = pneg %p232
        %p421 = scmp.lt.s32.totalorder %s26, 1
        %s422 = scalar_select %p421, %s26, 1
        %s423 = smul.addr %s422, 8
        %s424 = scalar_lea.vmem %s8, %s423
        %s425 = smul.u32 8, %s26
        %s426 = smul.u32 8, %s26
        %p427 = scmp.lt.s32.totalorder %s26, 1
        %s428 = scalar_select %p427, %s26, 1
        %s429 = smul.addr %s428, 8
        %s430 = scalar_lea.vmem %s2, %s429
        %p431 = scmp.lt.s32.totalorder %s26, 1
        %s432 = scalar_select %p431, %s26, 1
        %s433 = smul.addr %s432, 8
        %s434 = scalar_lea.vmem %s3, %s433
        %p435 = scmp.lt.s32.totalorder %s26, 1
        %s436 = scalar_select %p435, %s26, 1
        %s437 = smul.addr %s436, 8
        %s438 = scalar_lea.vmem %s8, %s437
        %v440 = vld [vmem:[%s5] sm:$0xff]
        %v441 = vld [vmem:[%s359] sm:$0xff]
        %v442 = vld [vmem:[%s359 + $0x8] sm:$0xff]
        %s443 = scalar_lea.vmem %s359, 16 [#allocation2]
        %v444 = vld [vmem:[%s443] sm:$0xff]
        %v445 = vld [vmem:[%s443 + $0x8] sm:$0xff]
        %s446 = scalar_lea.vmem %s359, 32 [#allocation2]
        %v447 = vld [vmem:[%s446] sm:$0xff]
        %v448 = vld [vmem:[%s446 + $0x8] sm:$0xff]
        %s449 = scalar_lea.vmem %s359, 48 [#allocation2]
        %v450 = vld [vmem:[%s449] sm:$0xff]
        %v451 = vld [vmem:[%s449 + $0x8] sm:$0xff]
        %s452 = scalar_lea.vmem %s359, 64 [#allocation2]
        %v453 = vld [vmem:[%s452] sm:$0xff]
        %v454 = vld [vmem:[%s452 + $0x8] sm:$0xff]
        %s455 = scalar_lea.vmem %s359, 80 [#allocation2]
        %v456 = vld [vmem:[%s455] sm:$0xff]
        %v457 = vld [vmem:[%s455 + $0x8] sm:$0xff]
        %s458 = scalar_lea.vmem %s359, 96 [#allocation2]
        %v459 = vld [vmem:[%s458] sm:$0xff]
        %v460 = vld [vmem:[%s458 + $0x8] sm:$0xff]
        %s461 = scalar_lea.vmem %s359, 112 [#allocation2]
        %v462 = vld [vmem:[%s461] sm:$0xff]
        %v463 = vld [vmem:[%s461 + $0x8] sm:$0xff]
        %v464 = vld [vmem:[#allocation6] sm:$0xff]
        %v465 = vld [vmem:[#allocation6 + $0x8] sm:$0xff]
        %v466 = vld [vmem:[%s6] sm:$0x1]
        %v467 = vperm.slane %v466, 0
        %vm468 = vcmask 130048
        %v470 = vsel %vm468, %v441, 0
        %v473 = vsel %vm468, %v442, 0
        %v476 = vsel %vm468, %v444, 0
        %v479 = vsel %vm468, %v445, 0
        %v482 = vsel %vm468, %v447, 0
        %v485 = vsel %vm468, %v448, 0
        %v488 = vsel %vm468, %v450, 0
        %v491 = vsel %vm468, %v451, 0
        %v494 = vsel %vm468, %v453, 0
        %v497 = vsel %vm468, %v454, 0
        %v500 = vsel %vm468, %v456, 0
        %v503 = vsel %vm468, %v457, 0
        %v506 = vsel %vm468, %v459, 0
        %v509 = vsel %vm468, %v460, 0
        %v512 = vsel %vm468, %v462, 0
        %v515 = vsel %vm468, %v463, 0
        %517 = vmatpush.msra.mxu0 0.0
        %518 = vmatpush.msra.mxu0 0.0
        %519 = vmatpush.msra.mxu0 0.0
        %520 = vmatpush.msra.mxu0 0.0
        %521 = vmatpush.msra.mxu0 0.0
        %522 = vmatpush.msra.mxu0 0.0
        %523 = vmatpush.msra.mxu0 0.0
        %524 = vmatpush.msra.mxu0 0.0
        %525 = vmatpush.msra.mxu0 0.0
        %526 = vmatpush.msra.mxu0 0.0
        %527 = vmatpush.msra.mxu0 0.0
        %528 = vmatpush.msra.mxu0 0.0
        %529 = vmatpush.msra.mxu0 0.0
        %530 = vmatpush.msra.mxu0 0.0
        %531 = vmatpush.msra.mxu0 %v465
        %532 = vmatpush.msra.mxu0 %v464
        %533 = vmatmul.f32.gmra.mxu0 %v470
        %v534 = vpop.f32.mrf.mxu0
        %v535 = vadd.f32 %v467, %v534
        %536 = vmatmul.f32.gmra.mxu0 %v473
        %v537 = vpop.f32.mrf.mxu0
        %v538 = vadd.f32 %v467, %v537
        %539 = vmatmul.f32.gmra.mxu0 %v476
        %v540 = vpop.f32.mrf.mxu0
        %v541 = vadd.f32 %v467, %v540
        %542 = vmatmul.f32.gmra.mxu0 %v479
        %v543 = vpop.f32.mrf.mxu0
        %v544 = vadd.f32 %v467, %v543
        %545 = vmatmul.f32.gmra.mxu0 %v482
        %v546 = vpop.f32.mrf.mxu0
        %v547 = vadd.f32 %v467, %v546
        %548 = vmatmul.f32.gmra.mxu0 %v485
        %v549 = vpop.f32.mrf.mxu0
        %v550 = vadd.f32 %v467, %v549
        %551 = vmatmul.f32.gmra.mxu0 %v488
        %v552 = vpop.f32.mrf.mxu0
        %v553 = vadd.f32 %v467, %v552
        %554 = vmatmul.f32.gmra.mxu0 %v491
        %v555 = vpop.f32.mrf.mxu0
        %v556 = vadd.f32 %v467, %v555
        %557 = vmatmul.f32.gmra.mxu0 %v494
        %v558 = vpop.f32.mrf.mxu0
        %v559 = vadd.f32 %v467, %v558
        %560 = vmatmul.f32.gmra.mxu0 %v497
        %v561 = vpop.f32.mrf.mxu0
        %v562 = vadd.f32 %v467, %v561
        %563 = vmatmul.f32.gmra.mxu0 %v500
        %v564 = vpop.f32.mrf.mxu0
        %v565 = vadd.f32 %v467, %v564
        %566 = vmatmul.f32.gmra.mxu0 %v503
        %v567 = vpop.f32.mrf.mxu0
        %v568 = vadd.f32 %v467, %v567
        %569 = vmatmul.f32.gmra.mxu0 %v506
        %v570 = vpop.f32.mrf.mxu0
        %v571 = vadd.f32 %v467, %v570
        %572 = vmatmul.f32.gmra.mxu0 %v509
        %v573 = vpop.f32.mrf.mxu0
        %v574 = vadd.f32 %v467, %v573
        %575 = vmatmul.f32.gmra.mxu0 %v512
        %v576 = vpop.f32.mrf.mxu0
        %v577 = vadd.f32 %v467, %v576
        %578 = vmatmul.f32.gmra.mxu0 %v515
        %v579 = vpop.f32.mrf.mxu0
        %v580 = vadd.f32 %v467, %v579
        %581 = vdwg.mxu0
        %vm582 = vcmp.gt.f32.partialorder %v535, 0.0
        %vm583 = vcmp.gt.f32.partialorder %v538, 0.0
        %vm584 = vcmp.gt.f32.partialorder %v541, 0.0
        %vm585 = vcmp.gt.f32.partialorder %v544, 0.0
        %vm586 = vcmp.gt.f32.partialorder %v547, 0.0
        %vm587 = vcmp.gt.f32.partialorder %v550, 0.0
        %vm588 = vcmp.gt.f32.partialorder %v553, 0.0
        %vm589 = vcmp.gt.f32.partialorder %v556, 0.0
        %vm590 = vcmp.gt.f32.partialorder %v559, 0.0
        %vm591 = vcmp.gt.f32.partialorder %v562, 0.0
        %vm592 = vcmp.gt.f32.partialorder %v565, 0.0
        %vm593 = vcmp.gt.f32.partialorder %v568, 0.0
        %vm594 = vcmp.gt.f32.partialorder %v571, 0.0
        %vm595 = vcmp.gt.f32.partialorder %v574, 0.0
        %vm596 = vcmp.gt.f32.partialorder %v577, 0.0
        %vm597 = vcmp.gt.f32.partialorder %v580, 0.0
        %v598 = vmin.f32 %v535, 0.0
        %v599 = vmin.f32 %v538, 0.0
        %v600 = vmin.f32 %v541, 0.0
        %v601 = vmin.f32 %v544, 0.0
        %v602 = vmin.f32 %v547, 0.0
        %v603 = vmin.f32 %v550, 0.0
        %v604 = vmin.f32 %v553, 0.0
        %v605 = vmin.f32 %v556, 0.0
        %v606 = vmin.f32 %v559, 0.0
        %v607 = vmin.f32 %v562, 0.0
        %v608 = vmin.f32 %v565, 0.0
        %v609 = vmin.f32 %v568, 0.0
        %v610 = vmin.f32 %v571, 0.0
        %v611 = vmin.f32 %v574, 0.0
        %v612 = vmin.f32 %v577, 0.0
        %v613 = vmin.f32 %v580, 0.0
        %v614 = vmul.f32 %v598, 1.442695
        %v615 = vpow.pop %v614
        %v616 = vmul.f32 %v599, 1.442695
        %v617 = vpow.pop %v616
        %v618 = vmul.f32 %v600, 1.442695
        %v619 = vpow.pop %v618
        %v620 = vmul.f32 %v601, 1.442695
        %v621 = vpow.pop %v620
        %v622 = vmul.f32 %v602, 1.442695
        %v623 = vpow.pop %v622
        %v624 = vmul.f32 %v603, 1.442695
        %v625 = vpow.pop %v624
        %v626 = vmul.f32 %v604, 1.442695
        %v627 = vpow.pop %v626
        %v628 = vmul.f32 %v605, 1.442695
        %v629 = vpow.pop %v628
        %v630 = vmul.f32 %v606, 1.442695
        %v631 = vpow.pop %v630
        %v632 = vmul.f32 %v607, 1.442695
        %v633 = vpow.pop %v632
        %v634 = vmul.f32 %v608, 1.442695
        %v635 = vpow.pop %v634
        %v636 = vmul.f32 %v609, 1.442695
        %v637 = vpow.pop %v636
        %v638 = vmul.f32 %v610, 1.442695
        %v639 = vpow.pop %v638
        %v640 = vmul.f32 %v611, 1.442695
        %v641 = vpow.pop %v640
        %v642 = vmul.f32 %v612, 1.442695
        %v643 = vpow.pop %v642
        %v644 = vmul.f32 %v613, 1.442695
        %v645 = vpow.pop %v644
        %v646 = vsub.f32 %v615, 1.0
        %v647 = vsub.f32 %v617, 1.0
        %v648 = vsub.f32 %v619, 1.0
        %v649 = vsub.f32 %v621, 1.0
        %v650 = vsub.f32 %v623, 1.0
        %v651 = vsub.f32 %v625, 1.0
        %v652 = vsub.f32 %v627, 1.0
        %v653 = vsub.f32 %v629, 1.0
        %v654 = vsub.f32 %v631, 1.0
        %v655 = vsub.f32 %v633, 1.0
        %v656 = vsub.f32 %v635, 1.0
        %v657 = vsub.f32 %v637, 1.0
        %v658 = vsub.f32 %v639, 1.0
        %v659 = vsub.f32 %v641, 1.0
        %v660 = vsub.f32 %v643, 1.0
        %v661 = vsub.f32 %v645, 1.0
        %v662 = vsel %vm582, %v535, %v646
        %v663 = vsel %vm583, %v538, %v647
        %v664 = vsel %vm584, %v541, %v648
        %v665 = vsel %vm585, %v544, %v649
        %v666 = vsel %vm586, %v547, %v650
        %v667 = vsel %vm587, %v550, %v651
        %v668 = vsel %vm588, %v553, %v652
        %v669 = vsel %vm589, %v556, %v653
        %v670 = vsel %vm590, %v559, %v654
        %v671 = vsel %vm591, %v562, %v655
        %v672 = vsel %vm592, %v565, %v656
        %v673 = vsel %vm593, %v568, %v657
        %v674 = vsel %vm594, %v571, %v658
        %v675 = vsel %vm595, %v574, %v659
        %v676 = vsel %vm596, %v577, %v660
        %v677 = vsel %vm597, %v580, %v661
        %678 = vmatpush.msra.mxu0 0.0
        %679 = vmatpush.msra.mxu0 0.0
        %680 = vmatpush.msra.mxu0 0.0
        %681 = vmatpush.msra.mxu0 0.0
        %682 = vmatpush.msra.mxu0 0.0
        %683 = vmatpush.msra.mxu0 0.0
        %684 = vmatpush.msra.mxu0 0.0
        %685 = vmatpush.msra.mxu0 0.0
        %686 = vmatpush.msra.mxu0 0.0
        %687 = vmatpush.msra.mxu0 0.0
        %688 = vmatpush.msra.mxu0 0.0
        %689 = vmatpush.msra.mxu0 0.0
        %690 = vmatpush.msra.mxu0 0.0
        %691 = vmatpush.msra.mxu0 0.0
        %692 = vmatpush.msra.mxu0 %v663
        %693 = vmatpush.msra.mxu0 %v662
        %694 = vmatmul.f32.gmra.mxu0 %v470
        %v695 = vpop.f32.mrf.mxu0
        %v696 = vadd.f32 0.0, %v695
        %697 = vmatmul.f32.gmra.mxu0 %v473
        %v698 = vpop.f32.mrf.mxu0
        %v699 = vadd.f32 0.0, %v698
        %700 = vdwg.mxu0
        %701 = vmatpush.msra.mxu0 0.0
        %702 = vmatpush.msra.mxu0 0.0
        %703 = vmatpush.msra.mxu0 0.0
        %704 = vmatpush.msra.mxu0 0.0
        %705 = vmatpush.msra.mxu0 0.0
        %706 = vmatpush.msra.mxu0 0.0
        %707 = vmatpush.msra.mxu0 0.0
        %708 = vmatpush.msra.mxu0 0.0
        %709 = vmatpush.msra.mxu0 0.0
        %710 = vmatpush.msra.mxu0 0.0
        %711 = vmatpush.msra.mxu0 0.0
        %712 = vmatpush.msra.mxu0 0.0
        %713 = vmatpush.msra.mxu0 0.0
        %714 = vmatpush.msra.mxu0 0.0
        %715 = vmatpush.msra.mxu0 %v665
        %716 = vmatpush.msra.mxu0 %v664
        %717 = vmatmul.f32.gmra.mxu0 %v476
        %v718 = vpop.f32.mrf.mxu0
        %v719 = vadd.f32 0.0, %v718
        %720 = vmatmul.f32.gmra.mxu0 %v479
        %v721 = vpop.f32.mrf.mxu0
        %v722 = vadd.f32 0.0, %v721
        %723 = vdwg.mxu0
        %724 = vmatpush.msra.mxu0 0.0
        %725 = vmatpush.msra.mxu0 0.0
        %726 = vmatpush.msra.mxu0 0.0
        %727 = vmatpush.msra.mxu0 0.0
        %728 = vmatpush.msra.mxu0 0.0
        %729 = vmatpush.msra.mxu0 0.0
        %730 = vmatpush.msra.mxu0 0.0
        %731 = vmatpush.msra.mxu0 0.0
        %732 = vmatpush.msra.mxu0 0.0
        %733 = vmatpush.msra.mxu0 0.0
        %734 = vmatpush.msra.mxu0 0.0
        %735 = vmatpush.msra.mxu0 0.0
        %736 = vmatpush.msra.mxu0 0.0
        %737 = vmatpush.msra.mxu0 0.0
        %738 = vmatpush.msra.mxu0 %v667
        %739 = vmatpush.msra.mxu0 %v666
        %740 = vmatmul.f32.gmra.mxu0 %v482
        %v741 = vpop.f32.mrf.mxu0
        %v742 = vadd.f32 0.0, %v741
        %743 = vmatmul.f32.gmra.mxu0 %v485
        %v744 = vpop.f32.mrf.mxu0
        %v745 = vadd.f32 0.0, %v744
        %746 = vdwg.mxu0
        %747 = vmatpush.msra.mxu0 0.0
        %748 = vmatpush.msra.mxu0 0.0
        %749 = vmatpush.msra.mxu0 0.0
        %750 = vmatpush.msra.mxu0 0.0
        %751 = vmatpush.msra.mxu0 0.0
        %752 = vmatpush.msra.mxu0 0.0
        %753 = vmatpush.msra.mxu0 0.0
        %754 = vmatpush.msra.mxu0 0.0
        %755 = vmatpush.msra.mxu0 0.0
        %756 = vmatpush.msra.mxu0 0.0
        %757 = vmatpush.msra.mxu0 0.0
        %758 = vmatpush.msra.mxu0 0.0
        %759 = vmatpush.msra.mxu0 0.0
        %760 = vmatpush.msra.mxu0 0.0
        %761 = vmatpush.msra.mxu0 %v669
        %762 = vmatpush.msra.mxu0 %v668
        %763 = vmatmul.f32.gmra.mxu0 %v488
        %v764 = vpop.f32.mrf.mxu0
        %v765 = vadd.f32 0.0, %v764
        %766 = vmatmul.f32.gmra.mxu0 %v491
        %v767 = vpop.f32.mrf.mxu0
        %v768 = vadd.f32 0.0, %v767
        %769 = vdwg.mxu0
        %770 = vmatpush.msra.mxu0 0.0
        %771 = vmatpush.msra.mxu0 0.0
        %772 = vmatpush.msra.mxu0 0.0
        %773 = vmatpush.msra.mxu0 0.0
        %774 = vmatpush.msra.mxu0 0.0
        %775 = vmatpush.msra.mxu0 0.0
        %776 = vmatpush.msra.mxu0 0.0
        %777 = vmatpush.msra.mxu0 0.0
        %778 = vmatpush.msra.mxu0 0.0
        %779 = vmatpush.msra.mxu0 0.0
        %780 = vmatpush.msra.mxu0 0.0
        %781 = vmatpush.msra.mxu0 0.0
        %782 = vmatpush.msra.mxu0 0.0
        %783 = vmatpush.msra.mxu0 0.0
        %784 = vmatpush.msra.mxu0 %v671
        %785 = vmatpush.msra.mxu0 %v670
        %786 = vmatmul.f32.gmra.mxu0 %v494
        %v787 = vpop.f32.mrf.mxu0
        %v788 = vadd.f32 0.0, %v787
        %789 = vmatmul.f32.gmra.mxu0 %v497
        %v790 = vpop.f32.mrf.mxu0
        %v791 = vadd.f32 0.0, %v790
        %792 = vdwg.mxu0
        %793 = vmatpush.msra.mxu0 0.0
        %794 = vmatpush.msra.mxu0 0.0
        %795 = vmatpush.msra.mxu0 0.0
        %796 = vmatpush.msra.mxu0 0.0
        %797 = vmatpush.msra.mxu0 0.0
        %798 = vmatpush.msra.mxu0 0.0
        %799 = vmatpush.msra.mxu0 0.0
        %800 = vmatpush.msra.mxu0 0.0
        %801 = vmatpush.msra.mxu0 0.0
        %802 = vmatpush.msra.mxu0 0.0
        %803 = vmatpush.msra.mxu0 0.0
        %804 = vmatpush.msra.mxu0 0.0
        %805 = vmatpush.msra.mxu0 0.0
        %806 = vmatpush.msra.mxu0 0.0
        %807 = vmatpush.msra.mxu0 %v673
        %808 = vmatpush.msra.mxu0 %v672
        %809 = vmatmul.f32.gmra.mxu0 %v500
        %v810 = vpop.f32.mrf.mxu0
        %v811 = vadd.f32 0.0, %v810
        %812 = vmatmul.f32.gmra.mxu0 %v503
        %v813 = vpop.f32.mrf.mxu0
        %v814 = vadd.f32 0.0, %v813
        %815 = vdwg.mxu0
        %816 = vmatpush.msra.mxu0 0.0
        %817 = vmatpush.msra.mxu0 0.0
        %818 = vmatpush.msra.mxu0 0.0
        %819 = vmatpush.msra.mxu0 0.0
        %820 = vmatpush.msra.mxu0 0.0
        %821 = vmatpush.msra.mxu0 0.0
        %822 = vmatpush.msra.mxu0 0.0
        %823 = vmatpush.msra.mxu0 0.0
        %824 = vmatpush.msra.mxu0 0.0
        %825 = vmatpush.msra.mxu0 0.0
        %826 = vmatpush.msra.mxu0 0.0
        %827 = vmatpush.msra.mxu0 0.0
        %828 = vmatpush.msra.mxu0 0.0
        %829 = vmatpush.msra.mxu0 0.0
        %830 = vmatpush.msra.mxu0 %v675
        %831 = vmatpush.msra.mxu0 %v674
        %832 = vmatmul.f32.gmra.mxu0 %v506
        %v833 = vpop.f32.mrf.mxu0
        %v834 = vadd.f32 0.0, %v833
        %835 = vmatmul.f32.gmra.mxu0 %v509
        %v836 = vpop.f32.mrf.mxu0
        %v837 = vadd.f32 0.0, %v836
        %838 = vdwg.mxu0
        %839 = vmatpush.msra.mxu0 0.0
        %840 = vmatpush.msra.mxu0 0.0
        %841 = vmatpush.msra.mxu0 0.0
        %842 = vmatpush.msra.mxu0 0.0
        %843 = vmatpush.msra.mxu0 0.0
        %844 = vmatpush.msra.mxu0 0.0
        %845 = vmatpush.msra.mxu0 0.0
        %846 = vmatpush.msra.mxu0 0.0
        %847 = vmatpush.msra.mxu0 0.0
        %848 = vmatpush.msra.mxu0 0.0
        %849 = vmatpush.msra.mxu0 0.0
        %850 = vmatpush.msra.mxu0 0.0
        %851 = vmatpush.msra.mxu0 0.0
        %852 = vmatpush.msra.mxu0 0.0
        %853 = vmatpush.msra.mxu0 %v677
        %854 = vmatpush.msra.mxu0 %v676
        %855 = vmatmul.f32.gmra.mxu0 %v512
        %v856 = vpop.f32.mrf.mxu0
        %v857 = vadd.f32 0.0, %v856
        %858 = vmatmul.f32.gmra.mxu0 %v515
        %v859 = vpop.f32.mrf.mxu0
        %v860 = vadd.f32 0.0, %v859
        %861 = vdwg.mxu0
        %s862 = scalar_lea.vmem [#allocation6], 16
        %v863 = vld [vmem:[%s862] sm:$0xff]
        %v864 = vld [vmem:[%s862 + $0x8] sm:$0xff]
        %v865 = vld [vmem:[%s6 + $0x1] sm:$0x1]
        %v866 = vperm.slane %v865, 0
        %v868 = vsel %vm468, %v696, 0
        %v871 = vsel %vm468, %v699, 0
        %v874 = vsel %vm468, %v719, 0
        %v877 = vsel %vm468, %v722, 0
        %v880 = vsel %vm468, %v742, 0
        %v883 = vsel %vm468, %v745, 0
        %v886 = vsel %vm468, %v765, 0
        %v889 = vsel %vm468, %v768, 0
        %v892 = vsel %vm468, %v788, 0
        %v895 = vsel %vm468, %v791, 0
        %v898 = vsel %vm468, %v811, 0
        %v901 = vsel %vm468, %v814, 0
        %v904 = vsel %vm468, %v834, 0
        %v907 = vsel %vm468, %v837, 0
        %v910 = vsel %vm468, %v857, 0
        %v913 = vsel %vm468, %v860, 0
        %915 = vmatpush.msra.mxu0 0.0
        %916 = vmatpush.msra.mxu0 0.0
        %917 = vmatpush.msra.mxu0 0.0
        %918 = vmatpush.msra.mxu0 0.0
        %919 = vmatpush.msra.mxu0 0.0
        %920 = vmatpush.msra.mxu0 0.0
        %921 = vmatpush.msra.mxu0 0.0
        %922 = vmatpush.msra.mxu0 0.0
        %923 = vmatpush.msra.mxu0 0.0
        %924 = vmatpush.msra.mxu0 0.0
        %925 = vmatpush.msra.mxu0 0.0
        %926 = vmatpush.msra.mxu0 0.0
        %927 = vmatpush.msra.mxu0 0.0
        %928 = vmatpush.msra.mxu0 0.0
        %929 = vmatpush.msra.mxu0 %v864
        %930 = vmatpush.msra.mxu0 %v863
        %931 = vmatmul.f32.gmra.mxu0 %v868
        %v932 = vpop.f32.mrf.mxu0
        %v933 = vadd.f32 %v866, %v932
        %934 = vmatmul.f32.gmra.mxu0 %v871
        %v935 = vpop.f32.mrf.mxu0
        %v936 = vadd.f32 %v866, %v935
        %937 = vmatmul.f32.gmra.mxu0 %v874
        %v938 = vpop.f32.mrf.mxu0
        %v939 = vadd.f32 %v866, %v938
        %940 = vmatmul.f32.gmra.mxu0 %v877
        %v941 = vpop.f32.mrf.mxu0
        %v942 = vadd.f32 %v866, %v941
        %943 = vmatmul.f32.gmra.mxu0 %v880
        %v944 = vpop.f32.mrf.mxu0
        %v945 = vadd.f32 %v866, %v944
        %946 = vmatmul.f32.gmra.mxu0 %v883
        %v947 = vpop.f32.mrf.mxu0
        %v948 = vadd.f32 %v866, %v947
        %949 = vmatmul.f32.gmra.mxu0 %v886
        %v950 = vpop.f32.mrf.mxu0
        %v951 = vadd.f32 %v866, %v950
        %952 = vmatmul.f32.gmra.mxu0 %v889
        %v953 = vpop.f32.mrf.mxu0
        %v954 = vadd.f32 %v866, %v953
        %955 = vmatmul.f32.gmra.mxu0 %v892
        %v956 = vpop.f32.mrf.mxu0
        %v957 = vadd.f32 %v866, %v956
        %958 = vmatmul.f32.gmra.mxu0 %v895
        %v959 = vpop.f32.mrf.mxu0
        %v960 = vadd.f32 %v866, %v959
        %961 = vmatmul.f32.gmra.mxu0 %v898
        %v962 = vpop.f32.mrf.mxu0
        %v963 = vadd.f32 %v866, %v962
        %964 = vmatmul.f32.gmra.mxu0 %v901
        %v965 = vpop.f32.mrf.mxu0
        %v966 = vadd.f32 %v866, %v965
        %967 = vmatmul.f32.gmra.mxu0 %v904
        %v968 = vpop.f32.mrf.mxu0
        %v969 = vadd.f32 %v866, %v968
        %970 = vmatmul.f32.gmra.mxu0 %v907
        %v971 = vpop.f32.mrf.mxu0
        %v972 = vadd.f32 %v866, %v971
        %973 = vmatmul.f32.gmra.mxu0 %v910
        %v974 = vpop.f32.mrf.mxu0
        %v975 = vadd.f32 %v866, %v974
        %976 = vmatmul.f32.gmra.mxu0 %v913
        %v977 = vpop.f32.mrf.mxu0
        %v978 = vadd.f32 %v866, %v977
        %979 = vdwg.mxu0
        %vm980 = vcmp.gt.f32.partialorder %v933, 0.0
        %vm981 = vcmp.gt.f32.partialorder %v936, 0.0
        %vm982 = vcmp.gt.f32.partialorder %v939, 0.0
        %vm983 = vcmp.gt.f32.partialorder %v942, 0.0
        %vm984 = vcmp.gt.f32.partialorder %v945, 0.0
        %vm985 = vcmp.gt.f32.partialorder %v948, 0.0
        %vm986 = vcmp.gt.f32.partialorder %v951, 0.0
        %vm987 = vcmp.gt.f32.partialorder %v954, 0.0
        %vm988 = vcmp.gt.f32.partialorder %v957, 0.0
        %vm989 = vcmp.gt.f32.partialorder %v960, 0.0
        %vm990 = vcmp.gt.f32.partialorder %v963, 0.0
        %vm991 = vcmp.gt.f32.partialorder %v966, 0.0
        %vm992 = vcmp.gt.f32.partialorder %v969, 0.0
        %vm993 = vcmp.gt.f32.partialorder %v972, 0.0
        %vm994 = vcmp.gt.f32.partialorder %v975, 0.0
        %vm995 = vcmp.gt.f32.partialorder %v978, 0.0
        %v996 = vmin.f32 %v933, 0.0
        %v997 = vmin.f32 %v936, 0.0
        %v998 = vmin.f32 %v939, 0.0
        %v999 = vmin.f32 %v942, 0.0
        %v1000 = vmin.f32 %v945, 0.0
        %v1001 = vmin.f32 %v948, 0.0
        %v1002 = vmin.f32 %v951, 0.0
        %v1003 = vmin.f32 %v954, 0.0
        %v1004 = vmin.f32 %v957, 0.0
        %v1005 = vmin.f32 %v960, 0.0
        %v1006 = vmin.f32 %v963, 0.0
        %v1007 = vmin.f32 %v966, 0.0
        %v1008 = vmin.f32 %v969, 0.0
        %v1009 = vmin.f32 %v972, 0.0
        %v1010 = vmin.f32 %v975, 0.0
        %v1011 = vmin.f32 %v978, 0.0
        %v1012 = vmul.f32 %v996, 1.442695
        %v1013 = vpow.pop %v1012
        %v1014 = vmul.f32 %v997, 1.442695
        %v1015 = vpow.pop %v1014
        %v1016 = vmul.f32 %v998, 1.442695
        %v1017 = vpow.pop %v1016
        %v1018 = vmul.f32 %v999, 1.442695
        %v1019 = vpow.pop %v1018
        %v1020 = vmul.f32 %v1000, 1.442695
        %v1021 = vpow.pop %v1020
        %v1022 = vmul.f32 %v1001, 1.442695
        %v1023 = vpow.pop %v1022
        %v1024 = vmul.f32 %v1002, 1.442695
        %v1025 = vpow.pop %v1024
        %v1026 = vmul.f32 %v1003, 1.442695
        %v1027 = vpow.pop %v1026
        %v1028 = vmul.f32 %v1004, 1.442695
        %v1029 = vpow.pop %v1028
        %v1030 = vmul.f32 %v1005, 1.442695
        %v1031 = vpow.pop %v1030
        %v1032 = vmul.f32 %v1006, 1.442695
        %v1033 = vpow.pop %v1032
        %v1034 = vmul.f32 %v1007, 1.442695
        %v1035 = vpow.pop %v1034
        %v1036 = vmul.f32 %v1008, 1.442695
        %v1037 = vpow.pop %v1036
        %v1038 = vmul.f32 %v1009, 1.442695
        %v1039 = vpow.pop %v1038
        %v1040 = vmul.f32 %v1010, 1.442695
        %v1041 = vpow.pop %v1040
        %v1042 = vmul.f32 %v1011, 1.442695
        %v1043 = vpow.pop %v1042
        %v1044 = vsub.f32 %v1013, 1.0
        %v1045 = vsub.f32 %v1015, 1.0
        %v1046 = vsub.f32 %v1017, 1.0
        %v1047 = vsub.f32 %v1019, 1.0
        %v1048 = vsub.f32 %v1021, 1.0
        %v1049 = vsub.f32 %v1023, 1.0
        %v1050 = vsub.f32 %v1025, 1.0
        %v1051 = vsub.f32 %v1027, 1.0
        %v1052 = vsub.f32 %v1029, 1.0
        %v1053 = vsub.f32 %v1031, 1.0
        %v1054 = vsub.f32 %v1033, 1.0
        %v1055 = vsub.f32 %v1035, 1.0
        %v1056 = vsub.f32 %v1037, 1.0
        %v1057 = vsub.f32 %v1039, 1.0
        %v1058 = vsub.f32 %v1041, 1.0
        %v1059 = vsub.f32 %v1043, 1.0
        %v1060 = vsel %vm980, %v933, %v1044
        %v1061 = vsel %vm981, %v936, %v1045
        %v1062 = vsel %vm982, %v939, %v1046
        %v1063 = vsel %vm983, %v942, %v1047
        %v1064 = vsel %vm984, %v945, %v1048
        %v1065 = vsel %vm985, %v948, %v1049
        %v1066 = vsel %vm986, %v951, %v1050
        %v1067 = vsel %vm987, %v954, %v1051
        %v1068 = vsel %vm988, %v957, %v1052
        %v1069 = vsel %vm989, %v960, %v1053
        %v1070 = vsel %vm990, %v963, %v1054
        %v1071 = vsel %vm991, %v966, %v1055
        %v1072 = vsel %vm992, %v969, %v1056
        %v1073 = vsel %vm993, %v972, %v1057
        %v1074 = vsel %vm994, %v975, %v1058
        %v1075 = vsel %vm995, %v978, %v1059
        %1076 = vmatpush.msra.mxu0 %v1075
        %1077 = vmatpush.msra.mxu0 %v1074
        %1078 = vmatpush.msra.mxu0 %v1073
        %1079 = vmatpush.msra.mxu0 %v1072
        %1080 = vmatpush.msra.mxu0 %v1071
        %1081 = vmatpush.msra.mxu0 %v1070
        %1082 = vmatpush.msra.mxu0 %v1069
        %1083 = vmatpush.msra.mxu0 %v1068
        %1084 = vmatpush.msra.mxu0 %v1067
        %1085 = vmatpush.msra.mxu0 %v1066
        %1086 = vmatpush.msra.mxu0 %v1065
        %1087 = vmatpush.msra.mxu0 %v1064
        %1088 = vmatpush.msra.mxu0 %v1063
        %1089 = vmatpush.msra.mxu0 %v1062
        %1090 = vmatpush.msra.mxu0 %v1061
        %1091 = vmatpush.msra.mxu0 %v1060
        %1092 = vmatmul.f32.gmra.mxu0 %v440
        %v1093 = vpop.f32.mrf.mxu0
        %v1094 = vadd.f32 0.0, %v1093
        %1095 = vdwg.mxu0
        %v1096 = vld [vmem:[%s369] sm:$0xff]
        %v1097 = vld [vmem:[%s369 + $0x8] sm:$0xff]
        %s1098 = scalar_lea.vmem %s369, 16 [#allocation4]
        %v1099 = vld [vmem:[%s1098] sm:$0xff]
        %v1100 = vld [vmem:[%s1098 + $0x8] sm:$0xff]
        %s1101 = scalar_lea.vmem %s369, 32 [#allocation4]
        %v1102 = vld [vmem:[%s1101] sm:$0xff]
        %v1103 = vld [vmem:[%s1101 + $0x8] sm:$0xff]
        %s1104 = scalar_lea.vmem %s369, 48 [#allocation4]
        %v1105 = vld [vmem:[%s1104] sm:$0xff]
        %v1106 = vld [vmem:[%s1104 + $0x8] sm:$0xff]
        %s1107 = scalar_lea.vmem %s369, 64 [#allocation4]
        %v1108 = vld [vmem:[%s1107] sm:$0xff]
        %v1109 = vld [vmem:[%s1107 + $0x8] sm:$0xff]
        %s1110 = scalar_lea.vmem %s369, 80 [#allocation4]
        %v1111 = vld [vmem:[%s1110] sm:$0xff]
        %v1112 = vld [vmem:[%s1110 + $0x8] sm:$0xff]
        %s1113 = scalar_lea.vmem %s369, 96 [#allocation4]
        %v1114 = vld [vmem:[%s1113] sm:$0xff]
        %v1115 = vld [vmem:[%s1113 + $0x8] sm:$0xff]
        %s1116 = scalar_lea.vmem %s369, 112 [#allocation4]
        %v1117 = vld [vmem:[%s1116] sm:$0xff]
        %v1118 = vld [vmem:[%s1116 + $0x8] sm:$0xff]
        %s1119 = scalar_lea.vmem [#allocation6], 32
        %v1120 = vld [vmem:[%s1119] sm:$0xff]
        %v1121 = vld [vmem:[%s1119 + $0x8] sm:$0xff]
        %v1122 = vld [vmem:[%s6 + $0x2] sm:$0x1]
        %v1123 = vperm.slane %v1122, 0
        %v1125 = vsel %vm468, %v1096, 0
        %v1128 = vsel %vm468, %v1097, 0
        %v1131 = vsel %vm468, %v1099, 0
        %v1134 = vsel %vm468, %v1100, 0
        %v1137 = vsel %vm468, %v1102, 0
        %v1140 = vsel %vm468, %v1103, 0
        %v1143 = vsel %vm468, %v1105, 0
        %v1146 = vsel %vm468, %v1106, 0
        %v1149 = vsel %vm468, %v1108, 0
        %v1152 = vsel %vm468, %v1109, 0
        %v1155 = vsel %vm468, %v1111, 0
        %v1158 = vsel %vm468, %v1112, 0
        %v1161 = vsel %vm468, %v1114, 0
        %v1164 = vsel %vm468, %v1115, 0
        %v1167 = vsel %vm468, %v1117, 0
        %v1170 = vsel %vm468, %v1118, 0
        %1172 = vmatpush.msra.mxu0 0.0
        %1173 = vmatpush.msra.mxu0 0.0
        %1174 = vmatpush.msra.mxu0 0.0
        %1175 = vmatpush.msra.mxu0 0.0
        %1176 = vmatpush.msra.mxu0 0.0
        %1177 = vmatpush.msra.mxu0 0.0
        %1178 = vmatpush.msra.mxu0 0.0
        %1179 = vmatpush.msra.mxu0 0.0
        %1180 = vmatpush.msra.mxu0 0.0
        %1181 = vmatpush.msra.mxu0 0.0
        %1182 = vmatpush.msra.mxu0 0.0
        %1183 = vmatpush.msra.mxu0 0.0
        %1184 = vmatpush.msra.mxu0 0.0
        %1185 = vmatpush.msra.mxu0 0.0
        %1186 = vmatpush.msra.mxu0 %v1121
        %1187 = vmatpush.msra.mxu0 %v1120
        %1188 = vmatmul.f32.gmra.mxu0 %v1125
        %v1189 = vpop.f32.mrf.mxu0
        %v1190 = vadd.f32 %v1123, %v1189
        %1191 = vmatmul.f32.gmra.mxu0 %v1128
        %v1192 = vpop.f32.mrf.mxu0
        %v1193 = vadd.f32 %v1123, %v1192
        %1194 = vmatmul.f32.gmra.mxu0 %v1131
        %v1195 = vpop.f32.mrf.mxu0
        %v1196 = vadd.f32 %v1123, %v1195
        %1197 = vmatmul.f32.gmra.mxu0 %v1134
        %v1198 = vpop.f32.mrf.mxu0
        %v1199 = vadd.f32 %v1123, %v1198
        %1200 = vmatmul.f32.gmra.mxu0 %v1137
        %v1201 = vpop.f32.mrf.mxu0
        %v1202 = vadd.f32 %v1123, %v1201
        %1203 = vmatmul.f32.gmra.mxu0 %v1140
        %v1204 = vpop.f32.mrf.mxu0
        %v1205 = vadd.f32 %v1123, %v1204
        %1206 = vmatmul.f32.gmra.mxu0 %v1143
        %v1207 = vpop.f32.mrf.mxu0
        %v1208 = vadd.f32 %v1123, %v1207
        %1209 = vmatmul.f32.gmra.mxu0 %v1146
        %v1210 = vpop.f32.mrf.mxu0
        %v1211 = vadd.f32 %v1123, %v1210
        %1212 = vmatmul.f32.gmra.mxu0 %v1149
        %v1213 = vpop.f32.mrf.mxu0
        %v1214 = vadd.f32 %v1123, %v1213
        %1215 = vmatmul.f32.gmra.mxu0 %v1152
        %v1216 = vpop.f32.mrf.mxu0
        %v1217 = vadd.f32 %v1123, %v1216
        %1218 = vmatmul.f32.gmra.mxu0 %v1155
        %v1219 = vpop.f32.mrf.mxu0
        %v1220 = vadd.f32 %v1123, %v1219
        %1221 = vmatmul.f32.gmra.mxu0 %v1158
        %v1222 = vpop.f32.mrf.mxu0
        %v1223 = vadd.f32 %v1123, %v1222
        %1224 = vmatmul.f32.gmra.mxu0 %v1161
        %v1225 = vpop.f32.mrf.mxu0
        %v1226 = vadd.f32 %v1123, %v1225
        %1227 = vmatmul.f32.gmra.mxu0 %v1164
        %v1228 = vpop.f32.mrf.mxu0
        %v1229 = vadd.f32 %v1123, %v1228
        %1230 = vmatmul.f32.gmra.mxu0 %v1167
        %v1231 = vpop.f32.mrf.mxu0
        %v1232 = vadd.f32 %v1123, %v1231
        %1233 = vmatmul.f32.gmra.mxu0 %v1170
        %v1234 = vpop.f32.mrf.mxu0
        %v1235 = vadd.f32 %v1123, %v1234
        %1236 = vdwg.mxu0
        %vm1237 = vcmp.gt.f32.partialorder %v1190, 0.0
        %vm1238 = vcmp.gt.f32.partialorder %v1193, 0.0
        %vm1239 = vcmp.gt.f32.partialorder %v1196, 0.0
        %vm1240 = vcmp.gt.f32.partialorder %v1199, 0.0
        %vm1241 = vcmp.gt.f32.partialorder %v1202, 0.0
        %vm1242 = vcmp.gt.f32.partialorder %v1205, 0.0
        %vm1243 = vcmp.gt.f32.partialorder %v1208, 0.0
        %vm1244 = vcmp.gt.f32.partialorder %v1211, 0.0
        %vm1245 = vcmp.gt.f32.partialorder %v1214, 0.0
        %vm1246 = vcmp.gt.f32.partialorder %v1217, 0.0
        %vm1247 = vcmp.gt.f32.partialorder %v1220, 0.0
        %vm1248 = vcmp.gt.f32.partialorder %v1223, 0.0
        %vm1249 = vcmp.gt.f32.partialorder %v1226, 0.0
        %vm1250 = vcmp.gt.f32.partialorder %v1229, 0.0
        %vm1251 = vcmp.gt.f32.partialorder %v1232, 0.0
        %vm1252 = vcmp.gt.f32.partialorder %v1235, 0.0
        %v1253 = vmin.f32 %v1190, 0.0
        %v1254 = vmin.f32 %v1193, 0.0
        %v1255 = vmin.f32 %v1196, 0.0
        %v1256 = vmin.f32 %v1199, 0.0
        %v1257 = vmin.f32 %v1202, 0.0
        %v1258 = vmin.f32 %v1205, 0.0
        %v1259 = vmin.f32 %v1208, 0.0
        %v1260 = vmin.f32 %v1211, 0.0
        %v1261 = vmin.f32 %v1214, 0.0
        %v1262 = vmin.f32 %v1217, 0.0
        %v1263 = vmin.f32 %v1220, 0.0
        %v1264 = vmin.f32 %v1223, 0.0
        %v1265 = vmin.f32 %v1226, 0.0
        %v1266 = vmin.f32 %v1229, 0.0
        %v1267 = vmin.f32 %v1232, 0.0
        %v1268 = vmin.f32 %v1235, 0.0
        %v1269 = vmul.f32 %v1253, 1.442695
        %v1270 = vpow.pop %v1269
        %v1271 = vmul.f32 %v1254, 1.442695
        %v1272 = vpow.pop %v1271
        %v1273 = vmul.f32 %v1255, 1.442695
        %v1274 = vpow.pop %v1273
        %v1275 = vmul.f32 %v1256, 1.442695
        %v1276 = vpow.pop %v1275
        %v1277 = vmul.f32 %v1257, 1.442695
        %v1278 = vpow.pop %v1277
        %v1279 = vmul.f32 %v1258, 1.442695
        %v1280 = vpow.pop %v1279
        %v1281 = vmul.f32 %v1259, 1.442695
        %v1282 = vpow.pop %v1281
        %v1283 = vmul.f32 %v1260, 1.442695
        %v1284 = vpow.pop %v1283
        %v1285 = vmul.f32 %v1261, 1.442695
        %v1286 = vpow.pop %v1285
        %v1287 = vmul.f32 %v1262, 1.442695
        %v1288 = vpow.pop %v1287
        %v1289 = vmul.f32 %v1263, 1.442695
        %v1290 = vpow.pop %v1289
        %v1291 = vmul.f32 %v1264, 1.442695
        %v1292 = vpow.pop %v1291
        %v1293 = vmul.f32 %v1265, 1.442695
        %v1294 = vpow.pop %v1293
        %v1295 = vmul.f32 %v1266, 1.442695
        %v1296 = vpow.pop %v1295
        %v1297 = vmul.f32 %v1267, 1.442695
        %v1298 = vpow.pop %v1297
        %v1299 = vmul.f32 %v1268, 1.442695
        %v1300 = vpow.pop %v1299
        %v1301 = vsub.f32 %v1270, 1.0
        %v1302 = vsub.f32 %v1272, 1.0
        %v1303 = vsub.f32 %v1274, 1.0
        %v1304 = vsub.f32 %v1276, 1.0
        %v1305 = vsub.f32 %v1278, 1.0
        %v1306 = vsub.f32 %v1280, 1.0
        %v1307 = vsub.f32 %v1282, 1.0
        %v1308 = vsub.f32 %v1284, 1.0
        %v1309 = vsub.f32 %v1286, 1.0
        %v1310 = vsub.f32 %v1288, 1.0
        %v1311 = vsub.f32 %v1290, 1.0
        %v1312 = vsub.f32 %v1292, 1.0
        %v1313 = vsub.f32 %v1294, 1.0
        %v1314 = vsub.f32 %v1296, 1.0
        %v1315 = vsub.f32 %v1298, 1.0
        %v1316 = vsub.f32 %v1300, 1.0
        %v1317 = vsel %vm1237, %v1190, %v1301
        %v1318 = vsel %vm1238, %v1193, %v1302
        %v1319 = vsel %vm1239, %v1196, %v1303
        %v1320 = vsel %vm1240, %v1199, %v1304
        %v1321 = vsel %vm1241, %v1202, %v1305
        %v1322 = vsel %vm1242, %v1205, %v1306
        %v1323 = vsel %vm1243, %v1208, %v1307
        %v1324 = vsel %vm1244, %v1211, %v1308
        %v1325 = vsel %vm1245, %v1214, %v1309
        %v1326 = vsel %vm1246, %v1217, %v1310
        %v1327 = vsel %vm1247, %v1220, %v1311
        %v1328 = vsel %vm1248, %v1223, %v1312
        %v1329 = vsel %vm1249, %v1226, %v1313
        %v1330 = vsel %vm1250, %v1229, %v1314
        %v1331 = vsel %vm1251, %v1232, %v1315
        %v1332 = vsel %vm1252, %v1235, %v1316
        %1333 = vmatpush.msra.mxu0 0.0
        %1334 = vmatpush.msra.mxu0 0.0
        %1335 = vmatpush.msra.mxu0 0.0
        %1336 = vmatpush.msra.mxu0 0.0
        %1337 = vmatpush.msra.mxu0 0.0
        %1338 = vmatpush.msra.mxu0 0.0
        %1339 = vmatpush.msra.mxu0 0.0
        %1340 = vmatpush.msra.mxu0 0.0
        %1341 = vmatpush.msra.mxu0 0.0
        %1342 = vmatpush.msra.mxu0 0.0
        %1343 = vmatpush.msra.mxu0 0.0
        %1344 = vmatpush.msra.mxu0 0.0
        %1345 = vmatpush.msra.mxu0 0.0
        %1346 = vmatpush.msra.mxu0 0.0
        %1347 = vmatpush.msra.mxu0 %v1318
        %1348 = vmatpush.msra.mxu0 %v1317
        %1349 = vmatmul.f32.gmra.mxu0 %v1125
        %v1350 = vpop.f32.mrf.mxu0
        %v1351 = vadd.f32 0.0, %v1350
        %1352 = vmatmul.f32.gmra.mxu0 %v1128
        %v1353 = vpop.f32.mrf.mxu0
        %v1354 = vadd.f32 0.0, %v1353
        %1355 = vdwg.mxu0
        %1356 = vmatpush.msra.mxu0 0.0
        %1357 = vmatpush.msra.mxu0 0.0
        %1358 = vmatpush.msra.mxu0 0.0
        %1359 = vmatpush.msra.mxu0 0.0
        %1360 = vmatpush.msra.mxu0 0.0
        %1361 = vmatpush.msra.mxu0 0.0
        %1362 = vmatpush.msra.mxu0 0.0
        %1363 = vmatpush.msra.mxu0 0.0
        %1364 = vmatpush.msra.mxu0 0.0
        %1365 = vmatpush.msra.mxu0 0.0
        %1366 = vmatpush.msra.mxu0 0.0
        %1367 = vmatpush.msra.mxu0 0.0
        %1368 = vmatpush.msra.mxu0 0.0
        %1369 = vmatpush.msra.mxu0 0.0
        %1370 = vmatpush.msra.mxu0 %v1320
        %1371 = vmatpush.msra.mxu0 %v1319
        %1372 = vmatmul.f32.gmra.mxu0 %v1131
        %v1373 = vpop.f32.mrf.mxu0
        %v1374 = vadd.f32 0.0, %v1373
        %1375 = vmatmul.f32.gmra.mxu0 %v1134
        %v1376 = vpop.f32.mrf.mxu0
        %v1377 = vadd.f32 0.0, %v1376
        %1378 = vdwg.mxu0
        %1379 = vmatpush.msra.mxu0 0.0
        %1380 = vmatpush.msra.mxu0 0.0
        %1381 = vmatpush.msra.mxu0 0.0
        %1382 = vmatpush.msra.mxu0 0.0
        %1383 = vmatpush.msra.mxu0 0.0
        %1384 = vmatpush.msra.mxu0 0.0
        %1385 = vmatpush.msra.mxu0 0.0
        %1386 = vmatpush.msra.mxu0 0.0
        %1387 = vmatpush.msra.mxu0 0.0
        %1388 = vmatpush.msra.mxu0 0.0
        %1389 = vmatpush.msra.mxu0 0.0
        %1390 = vmatpush.msra.mxu0 0.0
        %1391 = vmatpush.msra.mxu0 0.0
        %1392 = vmatpush.msra.mxu0 0.0
        %1393 = vmatpush.msra.mxu0 %v1322
        %1394 = vmatpush.msra.mxu0 %v1321
        %1395 = vmatmul.f32.gmra.mxu0 %v1137
        %v1396 = vpop.f32.mrf.mxu0
        %v1397 = vadd.f32 0.0, %v1396
        %1398 = vmatmul.f32.gmra.mxu0 %v1140
        %v1399 = vpop.f32.mrf.mxu0
        %v1400 = vadd.f32 0.0, %v1399
        %1401 = vdwg.mxu0
        %1402 = vmatpush.msra.mxu0 0.0
        %1403 = vmatpush.msra.mxu0 0.0
        %1404 = vmatpush.msra.mxu0 0.0
        %1405 = vmatpush.msra.mxu0 0.0
        %1406 = vmatpush.msra.mxu0 0.0
        %1407 = vmatpush.msra.mxu0 0.0
        %1408 = vmatpush.msra.mxu0 0.0
        %1409 = vmatpush.msra.mxu0 0.0
        %1410 = vmatpush.msra.mxu0 0.0
        %1411 = vmatpush.msra.mxu0 0.0
        %1412 = vmatpush.msra.mxu0 0.0
        %1413 = vmatpush.msra.mxu0 0.0
        %1414 = vmatpush.msra.mxu0 0.0
        %1415 = vmatpush.msra.mxu0 0.0
        %1416 = vmatpush.msra.mxu0 %v1324
        %1417 = vmatpush.msra.mxu0 %v1323
        %1418 = vmatmul.f32.gmra.mxu0 %v1143
        %v1419 = vpop.f32.mrf.mxu0
        %v1420 = vadd.f32 0.0, %v1419
        %1421 = vmatmul.f32.gmra.mxu0 %v1146
        %v1422 = vpop.f32.mrf.mxu0
        %v1423 = vadd.f32 0.0, %v1422
        %1424 = vdwg.mxu0
        %1425 = vmatpush.msra.mxu0 0.0
        %1426 = vmatpush.msra.mxu0 0.0
        %1427 = vmatpush.msra.mxu0 0.0
        %1428 = vmatpush.msra.mxu0 0.0
        %1429 = vmatpush.msra.mxu0 0.0
        %1430 = vmatpush.msra.mxu0 0.0
        %1431 = vmatpush.msra.mxu0 0.0
        %1432 = vmatpush.msra.mxu0 0.0
        %1433 = vmatpush.msra.mxu0 0.0
        %1434 = vmatpush.msra.mxu0 0.0
        %1435 = vmatpush.msra.mxu0 0.0
        %1436 = vmatpush.msra.mxu0 0.0
        %1437 = vmatpush.msra.mxu0 0.0
        %1438 = vmatpush.msra.mxu0 0.0
        %1439 = vmatpush.msra.mxu0 %v1326
        %1440 = vmatpush.msra.mxu0 %v1325
        %1441 = vmatmul.f32.gmra.mxu0 %v1149
        %v1442 = vpop.f32.mrf.mxu0
        %v1443 = vadd.f32 0.0, %v1442
        %1444 = vmatmul.f32.gmra.mxu0 %v1152
        %v1445 = vpop.f32.mrf.mxu0
        %v1446 = vadd.f32 0.0, %v1445
        %1447 = vdwg.mxu0
        %1448 = vmatpush.msra.mxu0 0.0
        %1449 = vmatpush.msra.mxu0 0.0
        %1450 = vmatpush.msra.mxu0 0.0
        %1451 = vmatpush.msra.mxu0 0.0
        %1452 = vmatpush.msra.mxu0 0.0
        %1453 = vmatpush.msra.mxu0 0.0
        %1454 = vmatpush.msra.mxu0 0.0
        %1455 = vmatpush.msra.mxu0 0.0
        %1456 = vmatpush.msra.mxu0 0.0
        %1457 = vmatpush.msra.mxu0 0.0
        %1458 = vmatpush.msra.mxu0 0.0
        %1459 = vmatpush.msra.mxu0 0.0
        %1460 = vmatpush.msra.mxu0 0.0
        %1461 = vmatpush.msra.mxu0 0.0
        %1462 = vmatpush.msra.mxu0 %v1328
        %1463 = vmatpush.msra.mxu0 %v1327
        %1464 = vmatmul.f32.gmra.mxu0 %v1155
        %v1465 = vpop.f32.mrf.mxu0
        %v1466 = vadd.f32 0.0, %v1465
        %1467 = vmatmul.f32.gmra.mxu0 %v1158
        %v1468 = vpop.f32.mrf.mxu0
        %v1469 = vadd.f32 0.0, %v1468
        %1470 = vdwg.mxu0
        %1471 = vmatpush.msra.mxu0 0.0
        %1472 = vmatpush.msra.mxu0 0.0
        %1473 = vmatpush.msra.mxu0 0.0
        %1474 = vmatpush.msra.mxu0 0.0
        %1475 = vmatpush.msra.mxu0 0.0
        %1476 = vmatpush.msra.mxu0 0.0
        %1477 = vmatpush.msra.mxu0 0.0
        %1478 = vmatpush.msra.mxu0 0.0
        %1479 = vmatpush.msra.mxu0 0.0
        %1480 = vmatpush.msra.mxu0 0.0
        %1481 = vmatpush.msra.mxu0 0.0
        %1482 = vmatpush.msra.mxu0 0.0
        %1483 = vmatpush.msra.mxu0 0.0
        %1484 = vmatpush.msra.mxu0 0.0
        %1485 = vmatpush.msra.mxu0 %v1330
        %1486 = vmatpush.msra.mxu0 %v1329
        %1487 = vmatmul.f32.gmra.mxu0 %v1161
        %v1488 = vpop.f32.mrf.mxu0
        %v1489 = vadd.f32 0.0, %v1488
        %1490 = vmatmul.f32.gmra.mxu0 %v1164
        %v1491 = vpop.f32.mrf.mxu0
        %v1492 = vadd.f32 0.0, %v1491
        %1493 = vdwg.mxu0
        %1494 = vmatpush.msra.mxu0 0.0
        %1495 = vmatpush.msra.mxu0 0.0
        %1496 = vmatpush.msra.mxu0 0.0
        %1497 = vmatpush.msra.mxu0 0.0
        %1498 = vmatpush.msra.mxu0 0.0
        %1499 = vmatpush.msra.mxu0 0.0
        %1500 = vmatpush.msra.mxu0 0.0
        %1501 = vmatpush.msra.mxu0 0.0
        %1502 = vmatpush.msra.mxu0 0.0
        %1503 = vmatpush.msra.mxu0 0.0
        %1504 = vmatpush.msra.mxu0 0.0
        %1505 = vmatpush.msra.mxu0 0.0
        %1506 = vmatpush.msra.mxu0 0.0
        %1507 = vmatpush.msra.mxu0 0.0
        %1508 = vmatpush.msra.mxu0 %v1332
        %1509 = vmatpush.msra.mxu0 %v1331
        %1510 = vmatmul.f32.gmra.mxu0 %v1167
        %v1511 = vpop.f32.mrf.mxu0
        %v1512 = vadd.f32 0.0, %v1511
        %1513 = vmatmul.f32.gmra.mxu0 %v1170
        %v1514 = vpop.f32.mrf.mxu0
        %v1515 = vadd.f32 0.0, %v1514
        %1516 = vdwg.mxu0
        %s1517 = scalar_lea.vmem [#allocation6], 48
        %v1518 = vld [vmem:[%s1517] sm:$0xff]
        %v1519 = vld [vmem:[%s1517 + $0x8] sm:$0xff]
        %v1520 = vld [vmem:[%s6 + $0x3] sm:$0x1]
        %v1521 = vperm.slane %v1520, 0
        %v1523 = vsel %vm468, %v1351, 0
        %v1526 = vsel %vm468, %v1354, 0
        %v1529 = vsel %vm468, %v1374, 0
        %v1532 = vsel %vm468, %v1377, 0
        %v1535 = vsel %vm468, %v1397, 0
        %v1538 = vsel %vm468, %v1400, 0
        %v1541 = vsel %vm468, %v1420, 0
        %v1544 = vsel %vm468, %v1423, 0
        %v1547 = vsel %vm468, %v1443, 0
        %v1550 = vsel %vm468, %v1446, 0
        %v1553 = vsel %vm468, %v1466, 0
        %v1556 = vsel %vm468, %v1469, 0
        %v1559 = vsel %vm468, %v1489, 0
        %v1562 = vsel %vm468, %v1492, 0
        %v1565 = vsel %vm468, %v1512, 0
        %v1568 = vsel %vm468, %v1515, 0
        %1570 = vmatpush.msra.mxu0 0.0
        %1571 = vmatpush.msra.mxu0 0.0
        %1572 = vmatpush.msra.mxu0 0.0
        %1573 = vmatpush.msra.mxu0 0.0
        %1574 = vmatpush.msra.mxu0 0.0
        %1575 = vmatpush.msra.mxu0 0.0
        %1576 = vmatpush.msra.mxu0 0.0
        %1577 = vmatpush.msra.mxu0 0.0
        %1578 = vmatpush.msra.mxu0 0.0
        %1579 = vmatpush.msra.mxu0 0.0
        %1580 = vmatpush.msra.mxu0 0.0
        %1581 = vmatpush.msra.mxu0 0.0
        %1582 = vmatpush.msra.mxu0 0.0
        %1583 = vmatpush.msra.mxu0 0.0
        %1584 = vmatpush.msra.mxu0 %v1519
        %1585 = vmatpush.msra.mxu0 %v1518
        %1586 = vmatmul.f32.gmra.mxu0 %v1523
        %v1587 = vpop.f32.mrf.mxu0
        %v1588 = vadd.f32 %v1521, %v1587
        %1589 = vmatmul.f32.gmra.mxu0 %v1526
        %v1590 = vpop.f32.mrf.mxu0
        %v1591 = vadd.f32 %v1521, %v1590
        %1592 = vmatmul.f32.gmra.mxu0 %v1529
        %v1593 = vpop.f32.mrf.mxu0
        %v1594 = vadd.f32 %v1521, %v1593
        %1595 = vmatmul.f32.gmra.mxu0 %v1532
        %v1596 = vpop.f32.mrf.mxu0
        %v1597 = vadd.f32 %v1521, %v1596
        %1598 = vmatmul.f32.gmra.mxu0 %v1535
        %v1599 = vpop.f32.mrf.mxu0
        %v1600 = vadd.f32 %v1521, %v1599
        %1601 = vmatmul.f32.gmra.mxu0 %v1538
        %v1602 = vpop.f32.mrf.mxu0
        %v1603 = vadd.f32 %v1521, %v1602
        %1604 = vmatmul.f32.gmra.mxu0 %v1541
        %v1605 = vpop.f32.mrf.mxu0
        %v1606 = vadd.f32 %v1521, %v1605
        %1607 = vmatmul.f32.gmra.mxu0 %v1544
        %v1608 = vpop.f32.mrf.mxu0
        %v1609 = vadd.f32 %v1521, %v1608
        %1610 = vmatmul.f32.gmra.mxu0 %v1547
        %v1611 = vpop.f32.mrf.mxu0
        %v1612 = vadd.f32 %v1521, %v1611
        %1613 = vmatmul.f32.gmra.mxu0 %v1550
        %v1614 = vpop.f32.mrf.mxu0
        %v1615 = vadd.f32 %v1521, %v1614
        %1616 = vmatmul.f32.gmra.mxu0 %v1553
        %v1617 = vpop.f32.mrf.mxu0
        %v1618 = vadd.f32 %v1521, %v1617
        %1619 = vmatmul.f32.gmra.mxu0 %v1556
        %v1620 = vpop.f32.mrf.mxu0
        %v1621 = vadd.f32 %v1521, %v1620
        %1622 = vmatmul.f32.gmra.mxu0 %v1559
        %v1623 = vpop.f32.mrf.mxu0
        %v1624 = vadd.f32 %v1521, %v1623
        %1625 = vmatmul.f32.gmra.mxu0 %v1562
        %v1626 = vpop.f32.mrf.mxu0
        %v1627 = vadd.f32 %v1521, %v1626
        %1628 = vmatmul.f32.gmra.mxu0 %v1565
        %v1629 = vpop.f32.mrf.mxu0
        %v1630 = vadd.f32 %v1521, %v1629
        %1631 = vmatmul.f32.gmra.mxu0 %v1568
        %v1632 = vpop.f32.mrf.mxu0
        %v1633 = vadd.f32 %v1521, %v1632
        %1634 = vdwg.mxu0
        %vm1635 = vcmp.gt.f32.partialorder %v1588, 0.0
        %vm1636 = vcmp.gt.f32.partialorder %v1591, 0.0
        %vm1637 = vcmp.gt.f32.partialorder %v1594, 0.0
        %vm1638 = vcmp.gt.f32.partialorder %v1597, 0.0
        %vm1639 = vcmp.gt.f32.partialorder %v1600, 0.0
        %vm1640 = vcmp.gt.f32.partialorder %v1603, 0.0
        %vm1641 = vcmp.gt.f32.partialorder %v1606, 0.0
        %vm1642 = vcmp.gt.f32.partialorder %v1609, 0.0
        %vm1643 = vcmp.gt.f32.partialorder %v1612, 0.0
        %vm1644 = vcmp.gt.f32.partialorder %v1615, 0.0
        %vm1645 = vcmp.gt.f32.partialorder %v1618, 0.0
        %vm1646 = vcmp.gt.f32.partialorder %v1621, 0.0
        %vm1647 = vcmp.gt.f32.partialorder %v1624, 0.0
        %vm1648 = vcmp.gt.f32.partialorder %v1627, 0.0
        %vm1649 = vcmp.gt.f32.partialorder %v1630, 0.0
        %vm1650 = vcmp.gt.f32.partialorder %v1633, 0.0
        %v1651 = vmin.f32 %v1588, 0.0
        %v1652 = vmin.f32 %v1591, 0.0
        %v1653 = vmin.f32 %v1594, 0.0
        %v1654 = vmin.f32 %v1597, 0.0
        %v1655 = vmin.f32 %v1600, 0.0
        %v1656 = vmin.f32 %v1603, 0.0
        %v1657 = vmin.f32 %v1606, 0.0
        %v1658 = vmin.f32 %v1609, 0.0
        %v1659 = vmin.f32 %v1612, 0.0
        %v1660 = vmin.f32 %v1615, 0.0
        %v1661 = vmin.f32 %v1618, 0.0
        %v1662 = vmin.f32 %v1621, 0.0
        %v1663 = vmin.f32 %v1624, 0.0
        %v1664 = vmin.f32 %v1627, 0.0
        %v1665 = vmin.f32 %v1630, 0.0
        %v1666 = vmin.f32 %v1633, 0.0
        %v1667 = vmul.f32 %v1651, 1.442695
        %v1668 = vpow.pop %v1667
        %v1669 = vmul.f32 %v1652, 1.442695
        %v1670 = vpow.pop %v1669
        %v1671 = vmul.f32 %v1653, 1.442695
        %v1672 = vpow.pop %v1671
        %v1673 = vmul.f32 %v1654, 1.442695
        %v1674 = vpow.pop %v1673
        %v1675 = vmul.f32 %v1655, 1.442695
        %v1676 = vpow.pop %v1675
        %v1677 = vmul.f32 %v1656, 1.442695
        %v1678 = vpow.pop %v1677
        %v1679 = vmul.f32 %v1657, 1.442695
        %v1680 = vpow.pop %v1679
        %v1681 = vmul.f32 %v1658, 1.442695
        %v1682 = vpow.pop %v1681
        %v1683 = vmul.f32 %v1659, 1.442695
        %v1684 = vpow.pop %v1683
        %v1685 = vmul.f32 %v1660, 1.442695
        %v1686 = vpow.pop %v1685
        %v1687 = vmul.f32 %v1661, 1.442695
        %v1688 = vpow.pop %v1687
        %v1689 = vmul.f32 %v1662, 1.442695
        %v1690 = vpow.pop %v1689
        %v1691 = vmul.f32 %v1663, 1.442695
        %v1692 = vpow.pop %v1691
        %v1693 = vmul.f32 %v1664, 1.442695
        %v1694 = vpow.pop %v1693
        %v1695 = vmul.f32 %v1665, 1.442695
        %v1696 = vpow.pop %v1695
        %v1697 = vmul.f32 %v1666, 1.442695
        %v1698 = vpow.pop %v1697
        %v1699 = vsub.f32 %v1668, 1.0
        %v1700 = vsub.f32 %v1670, 1.0
        %v1701 = vsub.f32 %v1672, 1.0
        %v1702 = vsub.f32 %v1674, 1.0
        %v1703 = vsub.f32 %v1676, 1.0
        %v1704 = vsub.f32 %v1678, 1.0
        %v1705 = vsub.f32 %v1680, 1.0
        %v1706 = vsub.f32 %v1682, 1.0
        %v1707 = vsub.f32 %v1684, 1.0
        %v1708 = vsub.f32 %v1686, 1.0
        %v1709 = vsub.f32 %v1688, 1.0
        %v1710 = vsub.f32 %v1690, 1.0
        %v1711 = vsub.f32 %v1692, 1.0
        %v1712 = vsub.f32 %v1694, 1.0
        %v1713 = vsub.f32 %v1696, 1.0
        %v1714 = vsub.f32 %v1698, 1.0
        %v1715 = vsel %vm1635, %v1588, %v1699
        %v1716 = vsel %vm1636, %v1591, %v1700
        %v1717 = vsel %vm1637, %v1594, %v1701
        %v1718 = vsel %vm1638, %v1597, %v1702
        %v1719 = vsel %vm1639, %v1600, %v1703
        %v1720 = vsel %vm1640, %v1603, %v1704
        %v1721 = vsel %vm1641, %v1606, %v1705
        %v1722 = vsel %vm1642, %v1609, %v1706
        %v1723 = vsel %vm1643, %v1612, %v1707
        %v1724 = vsel %vm1644, %v1615, %v1708
        %v1725 = vsel %vm1645, %v1618, %v1709
        %v1726 = vsel %vm1646, %v1621, %v1710
        %v1727 = vsel %vm1647, %v1624, %v1711
        %v1728 = vsel %vm1648, %v1627, %v1712
        %v1729 = vsel %vm1649, %v1630, %v1713
        %v1730 = vsel %vm1650, %v1633, %v1714
        %1731 = vmatpush.msra.mxu0 %v1730
        %1732 = vmatpush.msra.mxu0 %v1729
        %1733 = vmatpush.msra.mxu0 %v1728
        %1734 = vmatpush.msra.mxu0 %v1727
        %1735 = vmatpush.msra.mxu0 %v1726
        %1736 = vmatpush.msra.mxu0 %v1725
        %1737 = vmatpush.msra.mxu0 %v1724
        %1738 = vmatpush.msra.mxu0 %v1723
        %1739 = vmatpush.msra.mxu0 %v1722
        %1740 = vmatpush.msra.mxu0 %v1721
        %1741 = vmatpush.msra.mxu0 %v1720
        %1742 = vmatpush.msra.mxu0 %v1719
        %1743 = vmatpush.msra.mxu0 %v1718
        %1744 = vmatpush.msra.mxu0 %v1717
        %1745 = vmatpush.msra.mxu0 %v1716
        %1746 = vmatpush.msra.mxu0 %v1715
        %1747 = vmatmul.f32.gmra.mxu0 %v440
        %v1748 = vpop.f32.mrf.mxu0
        %v1749 = vadd.f32 0.0, %v1748
        %1750 = vdwg.mxu0
        %1752 = vrot.lane.b32.xlu0 %v1749, 16
        %v1753 = vpop.permute.xlu0 %1752
        %v1755 = vsel %vm468, %v1094, %v1753
        %v1756 = vld [vmem:[#allocation7] sm:$0xf]
        %v1757 = vld [vmem:[#allocation7 + $0x4] sm:$0xf]
        %v1758 = vld [vmem:[#allocation7 + $0x8] sm:$0xf]
        %v1759 = vld [vmem:[#allocation7 + $0xc] sm:$0xf]
        %v1760 = vpack.c.bf16 %v1755, %v1755
        %v1761 = vld [vmem:[%s6 + $0x4] sm:$0x1]
        %v1762 = vperm.slane %v1761, 0
        %v1767 = vunpack.c.l.b16 %v1756
        %v1768 = vunpack.c.l.b16 %v1757
        %v1769 = vunpack.c.l.b16 %v1758
        %v1770 = vunpack.c.l.b16 %v1759
        %v1771 = vpack.c.b16 %v1768, %v1767
        %v1772 = vpack.c.b16 %v1770, %v1769
        %vm1775 = vcmask 261120
        %v1777 = vsel %vm1775, %v1760, 0
        %1779 = vmatpush.bf16.msra.mxu0 0
        %1780 = vmatpush.bf16.msra.mxu0 0
        %1781 = vmatpush.bf16.msra.mxu0 0
        %1782 = vmatpush.bf16.msra.mxu0 0
        %1783 = vmatpush.bf16.msra.mxu0 0
        %1784 = vmatpush.bf16.msra.mxu0 0
        %1785 = vmatpush.bf16.msra.mxu0 %v1772
        %1786 = vmatpush.bf16.msra.mxu0 %v1771
        %1787 = vmatmul.bf16.gmra.mxu0 %v1777
        %v1788 = vpop.f32.mrf.mxu0
        %v1789 = vadd.f32 %v1762, %v1788
        %v1790 = vpop.f32.mrf.mxu0
        %1791 = vdwg.mxu0
        %vm1792 = vcmp.gt.f32.partialorder %v1789, 0.0
        %v1793 = vmin.f32 %v1789, 0.0
        %v1794 = vmul.f32 %v1793, 1.442695
        %v1795 = vpow.pop %v1794
        %v1796 = vsub.f32 %v1795, 1.0
        %v1797 = vsel %vm1792, %v1789, %v1796
        %v1798 = vld [vmem:[#allocation7 + $0x10] sm:$0xf]
        %v1799 = vld [vmem:[#allocation7 + $0x14] sm:$0xf]
        %v1800 = vld [vmem:[#allocation7 + $0x18] sm:$0xf]
        %v1801 = vld [vmem:[#allocation7 + $0x1c] sm:$0xf]
        %v1802 = vld [vmem:[#allocation7 + $0x20] sm:$0xf]
        %v1803 = vld [vmem:[#allocation7 + $0x24] sm:$0xf]
        %v1804 = vld [vmem:[#allocation7 + $0x28] sm:$0xf]
        %v1805 = vld [vmem:[#allocation7 + $0x2c] sm:$0xf]
        %v1806 = vpack.c.bf16 %v1797, %v1797
        %v1807 = vld [vmem:[%s6 + $0x5] sm:$0x1]
        %v1808 = vperm.slane %v1807, 0
        %v1817 = vunpack.c.l.b16 %v1798
        %v1818 = vunpack.c.l.b16 %v1799
        %v1819 = vunpack.c.l.b16 %v1800
        %v1820 = vunpack.c.l.b16 %v1801
        %v1821 = vunpack.c.l.b16 %v1802
        %v1822 = vunpack.c.l.b16 %v1803
        %v1823 = vunpack.c.l.b16 %v1804
        %v1824 = vunpack.c.l.b16 %v1805
        %v1825 = vpack.c.b16 %v1818, %v1817
        %v1826 = vpack.c.b16 %v1820, %v1819
        %v1827 = vpack.c.b16 %v1822, %v1821
        %v1828 = vpack.c.b16 %v1824, %v1823
        %vm1833 = vcmask 523264
        %v1835 = vsel %vm1833, %v1806, 0
        %1837 = vmatpush.bf16.msra.mxu0 0
        %1838 = vmatpush.bf16.msra.mxu0 0
        %1839 = vmatpush.bf16.msra.mxu0 0
        %1840 = vmatpush.bf16.msra.mxu0 0
        %1841 = vmatpush.bf16.msra.mxu0 %v1828
        %1842 = vmatpush.bf16.msra.mxu0 %v1827
        %1843 = vmatpush.bf16.msra.mxu0 %v1826
        %1844 = vmatpush.bf16.msra.mxu0 %v1825
        %1845 = vmatmul.bf16.gmra.mxu0 %v1835
        %v1846 = vpop.f32.mrf.mxu0
        %v1847 = vadd.f32 %v1808, %v1846
        %v1848 = vpop.f32.mrf.mxu0
        %1849 = vdwg.mxu0
        %vm1850 = vcmp.gt.f32.partialorder %v1847, 0.0
        %v1851 = vmin.f32 %v1847, 0.0
        %v1852 = vmul.f32 %v1851, 1.442695
        %v1853 = vpow.pop %v1852
        %v1854 = vsub.f32 %v1853, 1.0
        %v1855 = vsel %vm1850, %v1847, %v1854
        %v1856 = vld [vmem:[#allocation7 + $0x30] sm:$0xf]
        %v1857 = vld [vmem:[#allocation7 + $0x34] sm:$0xf]
        %v1858 = vld [vmem:[#allocation7 + $0x38] sm:$0xf]
        %v1859 = vld [vmem:[#allocation7 + $0x3c] sm:$0xf]
        %v1860 = vld [vmem:[#allocation7 + $0x40] sm:$0xf]
        %v1861 = vld [vmem:[#allocation7 + $0x44] sm:$0xf]
        %v1862 = vld [vmem:[#allocation7 + $0x48] sm:$0xf]
        %v1863 = vld [vmem:[#allocation7 + $0x4c] sm:$0xf]
        %v1864 = vld [vmem:[#allocation7 + $0x50] sm:$0xf]
        %v1865 = vld [vmem:[#allocation7 + $0x54] sm:$0xf]
        %v1866 = vld [vmem:[#allocation7 + $0x58] sm:$0xf]
        %v1867 = vld [vmem:[#allocation7 + $0x5c] sm:$0xf]
        %v1868 = vld [vmem:[#allocation7 + $0x60] sm:$0xf]
        %v1869 = vld [vmem:[#allocation7 + $0x64] sm:$0xf]
        %v1870 = vld [vmem:[#allocation7 + $0x68] sm:$0xf]
        %v1871 = vld [vmem:[#allocation7 + $0x6c] sm:$0xf]
        %v1872 = vpack.c.bf16 %v1855, %v1855
        %v1873 = vld [vmem:[%s6 + $0x6] sm:$0x1]
        %v1874 = vperm.slane %v1873, 0
        %v1891 = vunpack.c.l.b16 %v1856
        %v1892 = vunpack.c.l.b16 %v1857
        %v1893 = vunpack.c.l.b16 %v1858
        %v1894 = vunpack.c.l.b16 %v1859
        %v1895 = vunpack.c.l.b16 %v1860
        %v1896 = vunpack.c.l.b16 %v1861
        %v1897 = vunpack.c.l.b16 %v1862
        %v1898 = vunpack.c.l.b16 %v1863
        %v1899 = vunpack.c.l.b16 %v1864
        %v1900 = vunpack.c.l.b16 %v1865
        %v1901 = vunpack.c.l.b16 %v1866
        %v1902 = vunpack.c.l.b16 %v1867
        %v1903 = vunpack.c.l.b16 %v1868
        %v1904 = vunpack.c.l.b16 %v1869
        %v1905 = vunpack.c.l.b16 %v1870
        %v1906 = vunpack.c.l.b16 %v1871
        %v1907 = vpack.c.b16 %v1892, %v1891
        %v1908 = vpack.c.b16 %v1894, %v1893
        %v1909 = vpack.c.b16 %v1896, %v1895
        %v1910 = vpack.c.b16 %v1898, %v1897
        %v1911 = vpack.c.b16 %v1900, %v1899
        %v1912 = vpack.c.b16 %v1902, %v1901
        %v1913 = vpack.c.b16 %v1904, %v1903
        %v1914 = vpack.c.b16 %v1906, %v1905
        %1923 = vmatpush.bf16.msra.mxu0 %v1914
        %1924 = vmatpush.bf16.msra.mxu0 %v1913
        %1925 = vmatpush.bf16.msra.mxu0 %v1912
        %1926 = vmatpush.bf16.msra.mxu0 %v1911
        %1927 = vmatpush.bf16.msra.mxu0 %v1910
        %1928 = vmatpush.bf16.msra.mxu0 %v1909
        %1929 = vmatpush.bf16.msra.mxu0 %v1908
        %1930 = vmatpush.bf16.msra.mxu0 %v1907
        %1931 = vmatmul.bf16.gmra.mxu0 %v1872
        %v1932 = vpop.f32.mrf.mxu0
        %v1933 = vadd.f32 %v1874, %v1932
        %v1934 = vpop.f32.mrf.mxu0
        %1935 = vdwg.mxu0
        %vm1936 = vcmp.gt.f32.partialorder %v1933, 0.0
        %v1937 = vmin.f32 %v1933, 0.0
        %v1938 = vmul.f32 %v1937, 1.442695
        %v1939 = vpow.pop %v1938
        %v1940 = vsub.f32 %v1939, 1.0
        %v1941 = vsel %vm1936, %v1933, %v1940
        %v1942 = vld [vmem:[#allocation7 + $0x70] sm:$0xf]
        %v1943 = vld [vmem:[#allocation7 + $0x74] sm:$0xf]
        %v1944 = vld [vmem:[#allocation7 + $0x78] sm:$0xf]
        %v1945 = vld [vmem:[#allocation7 + $0x7c] sm:$0xf]
        %v1946 = vld [vmem:[#allocation7 + $0x80] sm:$0xf]
        %v1947 = vld [vmem:[#allocation7 + $0x84] sm:$0xf]
        %v1948 = vld [vmem:[#allocation7 + $0x88] sm:$0xf]
        %v1949 = vld [vmem:[#allocation7 + $0x8c] sm:$0xf]
        %v1950 = vpack.c.bf16 %v1941, %v1941
        %v1951 = vld [vmem:[%s6 + $0x7] sm:$0x1]
        %v1952 = vperm.slane %v1951, 0
        %v1961 = vunpack.c.l.b16 %v1942
        %v1962 = vunpack.c.l.b16 %v1943
        %v1963 = vunpack.c.l.b16 %v1944
        %v1964 = vunpack.c.l.b16 %v1945
        %v1965 = vunpack.c.l.b16 %v1946
        %v1966 = vunpack.c.l.b16 %v1947
        %v1967 = vunpack.c.l.b16 %v1948
        %v1968 = vunpack.c.l.b16 %v1949
        %v1969 = vpack.c.b16 %v1962, %v1961
        %v1970 = vpack.c.b16 %v1964, %v1963
        %v1971 = vpack.c.b16 %v1966, %v1965
        %v1972 = vpack.c.b16 %v1968, %v1967
        %v1978 = vsel %vm1833, %v1950, 0
        %1980 = vmatpush.bf16.msra.mxu0 0
        %1981 = vmatpush.bf16.msra.mxu0 0
        %1982 = vmatpush.bf16.msra.mxu0 0
        %1983 = vmatpush.bf16.msra.mxu0 0
        %1984 = vmatpush.bf16.msra.mxu0 %v1972
        %1985 = vmatpush.bf16.msra.mxu0 %v1971
        %1986 = vmatpush.bf16.msra.mxu0 %v1970
        %1987 = vmatpush.bf16.msra.mxu0 %v1969
        %1988 = vmatmul.bf16.gmra.mxu0 %v1978
        %v1989 = vpop.f32.mrf.mxu0
        %v1990 = vadd.f32 %v1952, %v1989
        %v1991 = vpop.f32.mrf.mxu0
        %1992 = vdwg.mxu0
        %vm1993 = vcmp.gt.f32.partialorder %v1990, 0.0
        %v1994 = vmin.f32 %v1990, 0.0
        %v1995 = vmul.f32 %v1994, 1.442695
        %v1996 = vpow.pop %v1995
        %v1997 = vsub.f32 %v1996, 1.0
        %v1998 = vsel %vm1993, %v1990, %v1997
        %v1999 = vld [vmem:[#allocation7 + $0x90] sm:$0xf]
        %v2000 = vld [vmem:[#allocation7 + $0x94] sm:$0xf]
        %v2001 = vld [vmem:[#allocation7 + $0x98] sm:$0xf]
        %v2002 = vpack.c.bf16 %v1998, %v1998
        %v2003 = vld [vmem:[%s6 + $0x8] sm:$0x1]
        %v2004 = vperm.slane %v2003, 0
        %v2008 = vunpack.c.l.b16 %v1999
        %v2009 = vunpack.c.l.b16 %v2000
        %v2010 = vunpack.c.l.b16 %v2001
        %v2011 = vpack.c.b16 %v2009, %v2008
        %v2012 = vpack.c.b16 %v2010, %v2010
        %vm2014 = vcmask 195584
        %v2016 = vsel %vm2014, %v2002, 0
        %vm2018 = vcmask 1043456
        %v2020 = vsel %vm2018, %v2012, 0
        %2022 = vmatpush.bf16.msra.mxu0 0
        %2023 = vmatpush.bf16.msra.mxu0 0
        %2024 = vmatpush.bf16.msra.mxu0 0
        %2025 = vmatpush.bf16.msra.mxu0 0
        %2026 = vmatpush.bf16.msra.mxu0 0
        %2027 = vmatpush.bf16.msra.mxu0 0
        %2028 = vmatpush.bf16.msra.mxu0 %v2020
        %2029 = vmatpush.bf16.msra.mxu0 %v2011
        %2030 = vmatmul.bf16.gmra.mxu0 %v2016
        %v2031 = vpop.f32.mrf.mxu0
        %v2032 = vadd.f32 %v2004, %v2031
        %v2033 = vpop.f32.mrf.mxu0
        %2034 = vdwg.mxu0
        %vm2035 = vcmask 31744
        %v2036 = vsel %vm2035, %v2032, -inf
        %2037 = vmax.xlane.f32.xlu0 %v2036
        %v2038 = vpop.xlane.xlu0 %2037
        %v2039 = vsub.f32 %v2032, %v2038
        %v2040 = vmul.f32 %v2039, 1.442695
        %v2041 = vpow.pop %v2040
        %v2042 = vsel %vm2035, %v2041, 0.0
        %2043 = vadd.xlane.f32.xlu0 %v2042
        %v2044 = vpop.xlane.xlu0 %2043
        %v2045 = vrcp.pop %v2044
        %v2046 = vmul.f32 %v2044, %v2045
        %v2047 = vsub.f32 1.0, %v2046
        %v2048 = vmul.f32 %v2045, %v2047
        %v2049 = vadd.f32 %v2045, %v2048
        %vm2050 = vweird.f32 %v2044
        %vm2051 = vweird.f32 %v2045
        %vm2052 = vmor %vm2050, %vm2051
        %v2053 = vsel %vm2052, %v2045, %v2049
        %v2054 = vand.u32 2147483647, %v2044
        %vm2055 = vcmp.eq.f32.partialorder %v2054, 8.507059e+37
        %v2056 = vand.u32 %v2044, 2147483648
        %v2057 = vor.u32 1.1754944e-38, %v2056
        %v2058 = vsel %vm2055, %v2057, %v2053
        %v2059 = vmul.f32 %v2041, %v2058
        %v2060 = vsub.f32 0.0, %v2032
        %v2061 = vmul.f32 %v2060, 1.442695
        %v2062 = vpow.pop %v2061
        %v2063 = vadd.f32 %v2062, 1.0
        %v2064 = vrcp.pop %v2063
        %v2065 = vmul.f32 %v2063, %v2064
        %v2066 = vsub.f32 1.0, %v2065
        %v2067 = vmul.f32 %v2064, %v2066
        %v2068 = vadd.f32 %v2064, %v2067
        %vm2069 = vweird.f32 %v2063
        %vm2070 = vweird.f32 %v2064
        %vm2071 = vmor %vm2069, %vm2070
        %v2072 = vsel %vm2071, %v2064, %v2068
        %v2073 = vand.u32 2147483647, %v2063
        %vm2074 = vcmp.eq.f32.partialorder %v2073, 8.507059e+37
        %v2075 = vand.u32 %v2063, 2147483648
        %v2076 = vor.u32 1.1754944e-38, %v2075
        %v2077 = vsel %vm2074, %v2076, %v2072
        %v2078 = vmul.f32 1.0, %v2077
        %v2079 = vld [vmem:[%s430] sm:$0xff]
        %v2080 = vld [vmem:[%s434] sm:$0xff]
        %v2081 = vmax.f32 %v2079, 0.0
        %v2082 = vmul.f32 %v2079, %v2059
        %v2083 = vsub.f32 %v2081, %v2082
        %v2084 = vand.u32 2147483647, %v2079
        %v2085 = vsub.f32 0.0, %v2084
        %v2086 = vmul.f32 %v2085, 1.442695
        %v2087 = vpow.pop %v2086
        %v2088 = vadd.f32 %v2087, 1.0
        %v2089 = vlog2.pop %v2088
        %v2090 = vmul.f32 %v2089, 0.6931472
        %v2091 = vadd.f32 %v2083, %v2090
        %v2092 = vsel %vm2035, %v2091, 0.0
        %2093 = vadd.xlane.f32.xlu0 %v2092
        %v2094 = vpop.xlane.xlu0 %2093
        %v2095 = vrcp.pop 4.0
        %v2096 = vmul.f32 4.0, %v2095
        %v2097 = vsub.f32 1.0, %v2096
        %v2098 = vmul.f32 %v2095, %v2097
        %v2099 = vadd.f32 %v2095, %v2098
        %vm2100 = vweird.f32 %v2095
        %v2101 = vsel %vm2100, %v2095, %v2099
        %v2102 = vmul.f32 %v2094, %v2101
        %v2103 = vmul.f32 %v2102, 5.0
        %2105 = vrot.lane.b32.xlu0 %v2078, 124
        %v2106 = vpop.permute.xlu0 %2105
        %v2108 = vsub.f32 %v2080, %v2106
        %v2109 = vmul.f32 %v2108, %v2108
        %v2110 = vadd.f32 %v2103, %v2109
        %2112 = vrot.lane.b32.xlu0 %v2110, 5
        %v2113 = vpop.permute.xlu0 %2112
        %v2115 = vsel %vm2035, %v2059, %v2078
        %vm2116 = vcmask 39936
        %v2117 = vsel %vm2116, %v2115, %v2113
        %vm2118 = vcmask 48128
        %v2119 = vsel %vm2118, %v2117, 0.0
        %2120 = vst [vmem:[%s438] sm:$0xff] %v2119
        %p2121 = scmp.lt.s32.totalorder %s26, 1
        %s2122 = scalar_select %p2121, %s26, 1
        %s2123 = smul.addr %s2122, 8
        %s2124 = scalar_lea.vmem %s8, %s2123
        // Predicated region
        $region69: #{_forward_batched_impl.1} parent=51 // pred_check
          %p2125 = pneg %p232
        $region70: #{_forward_batched_impl.1} parent=51 // pred_check_branch
          %2127 = sbr.rel (%p2125) target = $region72
        $region71: #{_forward_batched_impl.1} parent=51 // pred_region
          _
        $region72: #{_forward_batched_impl.1} parent=51 // pred_fallthru
          _
      $region52: #{_forward_batched_impl.1} parent=5 // pred_fallthru
        _
      %p2128 = scmp.le.s32.totalorder 2, %s21
      // Predicated region
      $region73: #{_forward_batched_impl.1} parent=5 // pred_check
        %p2129 = pneg %p2128
      $region74: #{_forward_batched_impl.1} parent=5 // pred_check_branch
        %2131 = sbr.rel (%p2129) target = $region76
      $region75: #{_forward_batched_impl.1} parent=5 // pred_region
        %s2132 = ssub.s32 %s21, 2
        // Predicated region
        $region77: #{_forward_batched_impl.1} parent=75 // pred_check
          %p2133 = pneg %p238
        $region78: #{_forward_batched_impl.1} parent=75 // pred_check_branch
          %2135 = sbr.rel (%p2133) target = $region80
        $region79: #{_forward_batched_impl.1} parent=75 // pred_region
          %p2136 = scmp.lt.s32.totalorder %s27, 1
          %s2137 = scalar_select %p2136, %s27, 1
          %s2138 = smul.addr %s2137, 8
          %s2139 = scalar_lea.vmem %s8, %s2138
        $region80: #{_forward_batched_impl.1} parent=75 // pred_fallthru
          _
      $region76: #{_forward_batched_impl.1} parent=5 // pred_fallthru
        _
    $region6: #{_forward_batched_impl.1} parent=1 // loop_footer
      %s25 = sadd.s32 1, %s21
    $region7: #{_forward_batched_impl.1} parent=1 // loop_footer_branch
      %20 = sbr.rel target = $region3
    $region8: #{_forward_batched_impl.1} parent=1 // loop_exit
      _
    %2140 = vsyncpa [#allocation3], 1
    %s2141 = scalar_lea.sflag [#allocation3], 1
    %2142 = vsyncpa %s2141, 1
    %2143 = vsyncpa [#allocation5], 1
    %s2144 = scalar_lea.sflag [#allocation5], 1
    %2145 = vsyncpa %s2144, 1
    %2146 = vsyncpa [#allocation8], 1

</llo_original>
